<compile_context>
chip_gen: v5e
topology: v5e:2x2
jax: 0.10.0
libtpu: 0.0.40
codegen_flags: <defaults>
</compile_context>

<pallas_src>
import functools

import jax
import jax.numpy as jnp
from jax.experimental import pallas as pl
from jax.experimental.pallas import tpu as pltpu

QN_IN_SIZE = 370
QN_OUT_SIZE = 98
HIDDEN_DIM = 256

K_PAD = 384      # 370 padded up to 3 * 128 (zero rows/cols -> numerics unchanged)
HEAD_PAD = 128   # 98 policy lanes + 1 value lane + 29 zero lanes


def _qnet_kernel(x_ref, w1_ref, b1_ref, w2_ref, b2_ref, wh_ref, bh_ref, head_ref):
    """Fused MLP forward for one batch tile.

    x_ref:  (TB, 384)  bf16   (cols 370..383 are zero)
    w1_ref: (384, 256) bf16,  b1_ref: (1, 256) f32
    w2_ref: (256, 256) bf16,  b2_ref: (1, 256) f32
    wh_ref: (256, 128) bf16,  bh_ref: (1, 128) f32   (fused policy+value head)
    head_ref: (TB, 128) f32   lane-dense output slab
    """
    # backbone layer 0: Linear(384, 256) + ReLU   (bf16 MXU, f32 accumulate)
    h = jnp.dot(x_ref[...], w1_ref[...],
                preferred_element_type=jnp.float32) + b1_ref[...]
    h = jnp.maximum(h, 0.0)

    # backbone layer 1: Linear(256, 256) + ReLU
    h = jnp.dot(h.astype(jnp.bfloat16), w2_ref[...],
                preferred_element_type=jnp.float32) + b2_ref[...]
    h = jnp.maximum(h, 0.0)

    # fused heads: one 128-wide matmul. Lane 98 holds the pre-tanh value;
    # tanh / slicing are cheap glue done in the wrapper.
    head = jnp.dot(h.astype(jnp.bfloat16), wh_ref[...],
                   preferred_element_type=jnp.float32) + bh_ref[...]
    head_ref[...] = head


def prepare_params(params):
    """One-time prep: pad K to 384, fuse heads into a 128-lane weight, cast to bf16."""
    w1 = jnp.zeros((K_PAD, HIDDEN_DIM), jnp.float32)
    w1 = w1.at[:QN_IN_SIZE, :].set(params["w1"]).astype(jnp.bfloat16)
    b1 = params["b1"].astype(jnp.float32)

    w2 = params["w2"].astype(jnp.bfloat16)
    b2 = params["b2"].astype(jnp.float32)

    pad_cols = HEAD_PAD - QN_OUT_SIZE - 1  # 29 zero lanes
    wh = jnp.concatenate(
        [params["wp"], params["wv"],
         jnp.zeros((HIDDEN_DIM, pad_cols), jnp.float32)], axis=1
    ).astype(jnp.bfloat16)
    bh = jnp.concatenate(
        [params["bp"], params["bv"],
         jnp.zeros((1, pad_cols), jnp.float32)], axis=1
    ).astype(jnp.float32)

    return dict(w1=w1, b1=b1, w2=w2, b2=b2, wh=wh, bh=bh)


@functools.partial(jax.jit, static_argnames=("batch_tile",))
def qnet_forward(x, prep, batch_tile=128):
    """Run the fused QNet forward pass.

    Args:
      x: [B, 370] float32. Any B (padded internally to a multiple of batch_tile).
      prep: output of prepare_params().
    Returns:
      (policy_logits [B, 98] f32, value [B] f32)
    """
    B = x.shape[0]
    n_tiles = (B + batch_tile - 1) // batch_tile
    Bp = n_tiles * batch_tile

    # Zero-pad batch rows and feature cols; cast activations to bf16.
    xp = jnp.zeros((Bp, K_PAD), jnp.bfloat16)
    xp = xp.at[:B, :QN_IN_SIZE].set(x.astype(jnp.bfloat16))

    # Weights/biases are broadcast across the batch grid (block index (0, 0)).
    def bcast(shape):
        return pl.BlockSpec(shape, lambda i: (0, 0))

    head = pl.pallas_call(
        _qnet_kernel,
        out_shape=jax.ShapeDtypeStruct((Bp, HEAD_PAD), jnp.float32),
        grid_spec=pltpu.PrefetchScalarGridSpec(
            num_scalar_prefetch=0,
            grid=(n_tiles,),
            in_specs=[
                pl.BlockSpec((batch_tile, K_PAD), lambda i: (i, 0)),  # x
                bcast((K_PAD, HIDDEN_DIM)),        # w1
                bcast((1, HIDDEN_DIM)),            # b1
                bcast((HIDDEN_DIM, HIDDEN_DIM)),   # w2
                bcast((1, HIDDEN_DIM)),            # b2
                bcast((HIDDEN_DIM, HEAD_PAD)),     # wh (fused policy|value|pad)
                bcast((1, HEAD_PAD)),              # bh
            ],
            out_specs=pl.BlockSpec((batch_tile, HEAD_PAD), lambda i: (i, 0)),
        ),
        compiler_params=pltpu.CompilerParams(
            dimension_semantics=("parallel",),   # shard batch tiles across TCs
            vmem_limit_bytes=64 * 1024 * 1024,   # explicit headroom (v7x: 64 MiB VMEM)
        ),
    )(xp, prep["w1"], prep["b1"], prep["w2"], prep["b2"], prep["wh"], prep["bh"])

    policy = head[:B, :QN_OUT_SIZE]
    value = jnp.tanh(head[:B, QN_OUT_SIZE])   # tanh + squeeze(-1) are glue
    return policy, value


def init_params(key):
    """Deterministic init mirroring nn.Linear's U(-1/sqrt(fan_in), 1/sqrt(fan_in))."""
    def linear(key, fan_in, fan_out):
        kw, kb = jax.random.split(key)
        bound = 1.0 / jnp.sqrt(jnp.float32(fan_in))
        w = jax.random.uniform(kw, (fan_in, fan_out), jnp.float32, -bound, bound)
        b = jax.random.uniform(kb, (1, fan_out), jnp.float32, -bound, bound)
        return w, b

    k1, k2, kp, kv = jax.random.split(key, 4)
    w1, b1 = linear(k1, QN_IN_SIZE, HIDDEN_DIM)
    w2, b2 = linear(k2, HIDDEN_DIM, HIDDEN_DIM)
    wp, bp = linear(kp, HIDDEN_DIM, QN_OUT_SIZE)
    wv, bv = linear(kv, HIDDEN_DIM, 1)
    return dict(w1=w1, b1=b1, w2=w2, b2=b2, wp=wp, bp=bp, wv=wv, bv=bv)


def qnet_reference(x, params):
    """Pure-JAX f32 reference of the PyTorch forward, for correctness checking."""
    h = jnp.maximum(x @ params["w1"] + params["b1"], 0.0)
    h = jnp.maximum(h @ params["w2"] + params["b2"], 0.0)
    policy = h @ params["wp"] + params["bp"]
    value = jnp.tanh(h @ params["wv"] + params["bv"])
    return policy, value[:, 0]


if __name__ == "__main__":
    key = jax.random.PRNGKey(0)
    kx, kparams = jax.random.split(key)

    # B=256 with batch_tile=128 -> 2 grid steps (both v7x TensorCores busy).
    B = 256
    x = jax.random.normal(kx, (B, QN_IN_SIZE), jnp.float32)
    params = init_params(kparams)
    prep = prepare_params(params)

    policy, value = qnet_forward(x, prep, batch_tile=128)
    policy = jax.block_until_ready(policy)
    value = jax.block_until_ready(value)

    ref_policy, ref_value = qnet_reference(x, params)
    assert policy.shape == (B, QN_OUT_SIZE)
    assert value.shape == (B,)
    # bf16 inputs/weights with f32 accumulation -> loose tolerance vs. f32 ref.
    assert jnp.allclose(policy, ref_policy, atol=5e-2, rtol=5e-2)
    assert jnp.allclose(value, ref_value, atol=5e-2, rtol=5e-2)

    print("KERNEL_OK")
</pallas_src>

<mosaic_0001>
module attributes {stable_mosaic.version = 11 : i64} {
  func.func @_qnet_kernel(%arg0: i32, %arg1: memref<128x384xbf16, #tpu.memory_space<vmem>>, %arg2: memref<384x256xbf16, #tpu.memory_space<vmem>>, %arg3: memref<1x256xf32, #tpu.memory_space<vmem>>, %arg4: memref<256x256xbf16, #tpu.memory_space<vmem>>, %arg5: memref<1x256xf32, #tpu.memory_space<vmem>>, %arg6: memref<256x128xbf16, #tpu.memory_space<vmem>>, %arg7: memref<1x128xf32, #tpu.memory_space<vmem>>, %arg8: memref<128x128xf32, #tpu.memory_space<vmem>>) attributes {dimension_semantics = [#tpu.dimension_semantics<parallel>], iteration_bounds = array<i64: 2>, scalar_prefetch = 0 : i64, scratch_operands = 0 : i64, tpu.core_type = #tpu.core_type<tc>, window_params = [{transform_indices = @transform_0, window_bounds = array<i64: 128, 384>}, {pipeline_mode = #tpu.pipeline_mode<synchronous>, transform_indices = @transform_1, window_bounds = array<i64: 384, 256>}, {pipeline_mode = #tpu.pipeline_mode<synchronous>, transform_indices = @transform_2, window_bounds = array<i64: 1, 256>}, {pipeline_mode = #tpu.pipeline_mode<synchronous>, transform_indices = @transform_3, window_bounds = array<i64: 256, 256>}, {pipeline_mode = #tpu.pipeline_mode<synchronous>, transform_indices = @transform_4, window_bounds = array<i64: 1, 256>}, {pipeline_mode = #tpu.pipeline_mode<synchronous>, transform_indices = @transform_5, window_bounds = array<i64: 256, 128>}, {pipeline_mode = #tpu.pipeline_mode<synchronous>, transform_indices = @transform_6, window_bounds = array<i64: 1, 128>}, {transform_indices = @transform_7, window_bounds = array<i64: 128, 128>}]} {
    %c0 = arith.constant 0 : index
    %c0_0 = arith.constant 0 : index
    %0 = vector.load %arg1[%c0, %c0_0] : memref<128x384xbf16, #tpu.memory_space<vmem>>, vector<128x384xbf16>
    %c0_1 = arith.constant 0 : index
    %c0_2 = arith.constant 0 : index
    %1 = vector.load %arg2[%c0_1, %c0_2] : memref<384x256xbf16, #tpu.memory_space<vmem>>, vector<384x256xbf16>
    %cst = arith.constant dense<0.000000e+00> : vector<128x256xf32>
    %2 = tpu.matmul %0, %1, %cst {dimension_numbers = #tpu.dot_dimension_numbers<[1], [0], [0], [1], [0, 0, 1, 1], [], []>} : vector<128x384xbf16>, vector<384x256xbf16>, vector<128x256xf32> -> vector<128x256xf32>
    %c0_3 = arith.constant 0 : index
    %c0_4 = arith.constant 0 : index
    %3 = vector.load %arg3[%c0_3, %c0_4] : memref<1x256xf32, #tpu.memory_space<vmem>>, vector<1x256xf32>
    %4 = vector.broadcast %3 : vector<1x256xf32> to vector<128x256xf32>
    %5 = arith.addf %2, %4 : vector<128x256xf32>
    %cst_5 = arith.constant 0.000000e+00 : f32
    %6 = vector.broadcast %cst_5 : f32 to vector<128x256xf32>
    %7 = arith.maximumf %5, %6 : vector<128x256xf32>
    %8 = arith.truncf %7 : vector<128x256xf32> to vector<128x256xbf16>
    %c0_6 = arith.constant 0 : index
    %c0_7 = arith.constant 0 : index
    %9 = vector.load %arg4[%c0_6, %c0_7] : memref<256x256xbf16, #tpu.memory_space<vmem>>, vector<256x256xbf16>
    %cst_8 = arith.constant dense<0.000000e+00> : vector<128x256xf32>
    %10 = tpu.matmul %8, %9, %cst_8 {dimension_numbers = #tpu.dot_dimension_numbers<[1], [0], [0], [1], [0, 0, 1, 1], [], []>} : vector<128x256xbf16>, vector<256x256xbf16>, vector<128x256xf32> -> vector<128x256xf32>
    %c0_9 = arith.constant 0 : index
    %c0_10 = arith.constant 0 : index
    %11 = vector.load %arg5[%c0_9, %c0_10] : memref<1x256xf32, #tpu.memory_space<vmem>>, vector<1x256xf32>
    %12 = vector.broadcast %11 : vector<1x256xf32> to vector<128x256xf32>
    %13 = arith.addf %10, %12 : vector<128x256xf32>
    %cst_11 = arith.constant 0.000000e+00 : f32
    %14 = vector.broadcast %cst_11 : f32 to vector<128x256xf32>
    %15 = arith.maximumf %13, %14 : vector<128x256xf32>
    %16 = arith.truncf %15 : vector<128x256xf32> to vector<128x256xbf16>
    %c0_12 = arith.constant 0 : index
    %c0_13 = arith.constant 0 : index
    %17 = vector.load %arg6[%c0_12, %c0_13] : memref<256x128xbf16, #tpu.memory_space<vmem>>, vector<256x128xbf16>
    %cst_14 = arith.constant dense<0.000000e+00> : vector<128x128xf32>
    %18 = tpu.matmul %16, %17, %cst_14 {dimension_numbers = #tpu.dot_dimension_numbers<[1], [0], [0], [1], [0, 0, 1, 1], [], []>} : vector<128x256xbf16>, vector<256x128xbf16>, vector<128x128xf32> -> vector<128x128xf32>
    %c0_15 = arith.constant 0 : index
    %c0_16 = arith.constant 0 : index
    %19 = vector.load %arg7[%c0_15, %c0_16] : memref<1x128xf32, #tpu.memory_space<vmem>>, vector<1x128xf32>
    %20 = vector.broadcast %19 : vector<1x128xf32> to vector<128x128xf32>
    %21 = arith.addf %18, %20 : vector<128x128xf32>
    %c0_17 = arith.constant 0 : index
    %c0_18 = arith.constant 0 : index
    %22 = vector.load %arg8[%c0_17, %c0_18] : memref<128x128xf32, #tpu.memory_space<vmem>>, vector<128x128xf32>
    tpu.vector_store %arg8[%c0_17, %c0_18], %21 {strides = array<i32>} : memref<128x128xf32, #tpu.memory_space<vmem>>, vector<128x128xf32>,
    return
  }
  func.func @transform_0(%arg0: i32) -> (i32, i32) {
    %c0_i32 = arith.constant 0 : i32
    %c0_i32_0 = arith.constant 0 : i32
    return %arg0, %c0_i32 : i32, i32
  }
  func.func @transform_1(%arg0: i32) -> (i32, i32) {
    %c0_i32 = arith.constant 0 : i32
    %c0_i32_0 = arith.constant 0 : i32
    %c0_i32_1 = arith.constant 0 : i32
    return %c0_i32, %c0_i32_0 : i32, i32
  }
  func.func @transform_2(%arg0: i32) -> (i32, i32) {
    %c0_i32 = arith.constant 0 : i32
    %c0_i32_0 = arith.constant 0 : i32
    %c0_i32_1 = arith.constant 0 : i32
    return %c0_i32, %c0_i32_0 : i32, i32
  }
  func.func @transform_3(%arg0: i32) -> (i32, i32) {
    %c0_i32 = arith.constant 0 : i32
    %c0_i32_0 = arith.constant 0 : i32
    %c0_i32_1 = arith.constant 0 : i32
    return %c0_i32, %c0_i32_0 : i32, i32
  }
  func.func @transform_4(%arg0: i32) -> (i32, i32) {
    %c0_i32 = arith.constant 0 : i32
    %c0_i32_0 = arith.constant 0 : i32
    %c0_i32_1 = arith.constant 0 : i32
    return %c0_i32, %c0_i32_0 : i32, i32
  }
  func.func @transform_5(%arg0: i32) -> (i32, i32) {
    %c0_i32 = arith.constant 0 : i32
    %c0_i32_0 = arith.constant 0 : i32
    %c0_i32_1 = arith.constant 0 : i32
    return %c0_i32, %c0_i32_0 : i32, i32
  }
  func.func @transform_6(%arg0: i32) -> (i32, i32) {
    %c0_i32 = arith.constant 0 : i32
    %c0_i32_0 = arith.constant 0 : i32
    %c0_i32_1 = arith.constant 0 : i32
    return %c0_i32, %c0_i32_0 : i32, i32
  }
  func.func @transform_7(%arg0: i32) -> (i32, i32) {
    %c0_i32 = arith.constant 0 : i32
    %c0_i32_0 = arith.constant 0 : i32
    return %arg0, %c0_i32 : i32, i32
  }
}

</mosaic_0001>

<llo_original>
// kernel: qnet_forward.1
$region0: #{qnet_forward.1}
  #allocation0 [shape = 'u32[]', space=smem, size = 0x4, offset = 0x4, fixed_abs, tag = 'smem constant byte address 0x4 - core index']
  #allocation1 [shape = 'u32[72,128]{1,0:T(1,128)}', space=vmem, size = 0x9000, scoped, tag = 'internal scratch']
  %s0 = inlined_call_operand.vmem [shape: bf16[256,384], index: 0, kind: input, shape index: {}]
  %s1 = inlined_call_operand.vmem [shape: bf16[384,256], index: 1, kind: input, shape index: {}]
  %s2 = inlined_call_operand.vmem [shape: f32[1,256], index: 2, kind: input, shape index: {}]
  %s3 = inlined_call_operand.vmem [shape: bf16[256,256], index: 3, kind: input, shape index: {}]
  %s4 = inlined_call_operand.vmem [shape: f32[1,256], index: 4, kind: input, shape index: {}]
  %s5 = inlined_call_operand.vmem [shape: bf16[256,128], index: 5, kind: input, shape index: {}]
  %s6 = inlined_call_operand.vmem [shape: f32[1,128], index: 6, kind: input, shape index: {}]
  %s7 = inlined_call_operand.vmem [shape: f32[256,128], index: 7, kind: output, shape index: {}]
  %s8 = sld [smem:[#allocation0]]
  $region61: #{qnet_forward.1} parent=0
    _
  %s10 = ssub.s32 1, %s8
  %s11 = scalar_select 0, %s10, %s8
  loop: start=0, step=1, limit=4
  $region2: #{qnet_forward.1} parent=0 // loop_pre_header
    _
  $region3: #{qnet_forward.1} parent=0 // loop_header
    %s13 = sphi 0, %s17
    %p14 = scmp.ge.s32.totalorder %s13, 4
    %s23 = sphi 0, %s25
    %s26 = sphi 0, %s23
    %s27 = sphi 0, %s26
    %s43 = sphi 0, %s27
    %s47 = sphi 0, %s47
    %s49 = sphi 0, %s47
    %s50 = sphi 0, %s49
    %s64 = sphi 0, %s50
    %s68 = sphi 0, %s68
    %s70 = sphi 0, %s68
    %s71 = sphi 0, %s70
    %s85 = sphi 0, %s71
    %s89 = sphi 0, %s89
    %s91 = sphi 0, %s89
    %s92 = sphi 0, %s91
    %s106 = sphi 0, %s92
    %s110 = sphi 0, %s110
    %s112 = sphi 0, %s110
    %s113 = sphi 0, %s112
    %s127 = sphi 0, %s113
    %s131 = sphi 0, %s131
    %s133 = sphi 0, %s131
    %s134 = sphi 0, %s133
    %s148 = sphi 0, %s134
    %s152 = sphi 0, %s152
    %s154 = sphi 0, %s152
    %s155 = sphi 0, %s154
    %s169 = sphi 0, %s155
    %s175 = sphi 0, %s177
    %s178 = sphi 0, %s175
    %s179 = sphi 0, %s178
    %s195 = sphi 0, %s179
  $region4: #{qnet_forward.1} parent=0 // loop_header_branch
    %16 = sbr.rel (%p14) target = $region8
  $region5: #{qnet_forward.1} parent=0 // loop_body
    %s18 = ssub.s32 %s13, 1
    %s19 = ssub.s32 %s13, 2
    %s20 = sadd.s32 %s13, 1
    %s21 = ssub.s32 %s13, %s20
    %p22 = scmp.eq.s32.totalorder %s21, 0
    %s24 = sadd.s32 %s23, 1
    %s25 = scalar_select %p22, %s23, %s24
    %p28 = pneg %p22
    %p29 = scmp.eq.s32.totalorder %s13, 1
    %p30 = por %p28, %p29
    %p31 = scmp.ne.s32.totalorder %s23, %s26
    %p32 = scmp.eq.s32.totalorder %s13, 0
    %p33 = por %p31, %p32
    %p34 = scmp.ne.s32.totalorder %s23, %s26
    %p35 = scmp.eq.s32.totalorder %s18, 1
    %p36 = por %p34, %p35
    %p37 = scmp.ne.s32.totalorder %s26, %s27
    %p38 = scmp.eq.s32.totalorder %s18, 0
    %p39 = por %p37, %p38
    %p40 = scmp.ne.s32.totalorder %s26, %s27
    %p41 = scmp.eq.s32.totalorder %s19, 1
    %p42 = por %p40, %p41
    %p44 = scmp.ne.s32.totalorder %s27, %s43
    %p45 = scmp.eq.s32.totalorder %s19, 0
    %p46 = por %p44, %p45
    %s48 = sadd.s32 %s47, 1
    %p51 = scmp.eq.s32.totalorder %s13, 1
    %p52 = scmp.ne.s32.totalorder %s47, %s49
    %p53 = scmp.eq.s32.totalorder %s13, 0
    %p54 = por %p52, %p53
    %p55 = scmp.ne.s32.totalorder %s47, %s49
    %p56 = scmp.eq.s32.totalorder %s18, 1
    %p57 = por %p55, %p56
    %p58 = scmp.ne.s32.totalorder %s49, %s50
    %p59 = scmp.eq.s32.totalorder %s18, 0
    %p60 = por %p58, %p59
    %p61 = scmp.ne.s32.totalorder %s49, %s50
    %p62 = scmp.eq.s32.totalorder %s19, 1
    %p63 = por %p61, %p62
    %p65 = scmp.ne.s32.totalorder %s50, %s64
    %p66 = scmp.eq.s32.totalorder %s19, 0
    %p67 = por %p65, %p66
    %s69 = sadd.s32 %s68, 1
    %p72 = scmp.eq.s32.totalorder %s13, 1
    %p73 = scmp.ne.s32.totalorder %s68, %s70
    %p74 = scmp.eq.s32.totalorder %s13, 0
    %p75 = por %p73, %p74
    %p76 = scmp.ne.s32.totalorder %s68, %s70
    %p77 = scmp.eq.s32.totalorder %s18, 1
    %p78 = por %p76, %p77
    %p79 = scmp.ne.s32.totalorder %s70, %s71
    %p80 = scmp.eq.s32.totalorder %s18, 0
    %p81 = por %p79, %p80
    %p82 = scmp.ne.s32.totalorder %s70, %s71
    %p83 = scmp.eq.s32.totalorder %s19, 1
    %p84 = por %p82, %p83
    %p86 = scmp.ne.s32.totalorder %s71, %s85
    %p87 = scmp.eq.s32.totalorder %s19, 0
    %p88 = por %p86, %p87
    %s90 = sadd.s32 %s89, 1
    %p93 = scmp.eq.s32.totalorder %s13, 1
    %p94 = scmp.ne.s32.totalorder %s89, %s91
    %p95 = scmp.eq.s32.totalorder %s13, 0
    %p96 = por %p94, %p95
    %p97 = scmp.ne.s32.totalorder %s89, %s91
    %p98 = scmp.eq.s32.totalorder %s18, 1
    %p99 = por %p97, %p98
    %p100 = scmp.ne.s32.totalorder %s91, %s92
    %p101 = scmp.eq.s32.totalorder %s18, 0
    %p102 = por %p100, %p101
    %p103 = scmp.ne.s32.totalorder %s91, %s92
    %p104 = scmp.eq.s32.totalorder %s19, 1
    %p105 = por %p103, %p104
    %p107 = scmp.ne.s32.totalorder %s92, %s106
    %p108 = scmp.eq.s32.totalorder %s19, 0
    %p109 = por %p107, %p108
    %s111 = sadd.s32 %s110, 1
    %p114 = scmp.eq.s32.totalorder %s13, 1
    %p115 = scmp.ne.s32.totalorder %s110, %s112
    %p116 = scmp.eq.s32.totalorder %s13, 0
    %p117 = por %p115, %p116
    %p118 = scmp.ne.s32.totalorder %s110, %s112
    %p119 = scmp.eq.s32.totalorder %s18, 1
    %p120 = por %p118, %p119
    %p121 = scmp.ne.s32.totalorder %s112, %s113
    %p122 = scmp.eq.s32.totalorder %s18, 0
    %p123 = por %p121, %p122
    %p124 = scmp.ne.s32.totalorder %s112, %s113
    %p125 = scmp.eq.s32.totalorder %s19, 1
    %p126 = por %p124, %p125
    %p128 = scmp.ne.s32.totalorder %s113, %s127
    %p129 = scmp.eq.s32.totalorder %s19, 0
    %p130 = por %p128, %p129
    %s132 = sadd.s32 %s131, 1
    %p135 = scmp.eq.s32.totalorder %s13, 1
    %p136 = scmp.ne.s32.totalorder %s131, %s133
    %p137 = scmp.eq.s32.totalorder %s13, 0
    %p138 = por %p136, %p137
    %p139 = scmp.ne.s32.totalorder %s131, %s133
    %p140 = scmp.eq.s32.totalorder %s18, 1
    %p141 = por %p139, %p140
    %p142 = scmp.ne.s32.totalorder %s133, %s134
    %p143 = scmp.eq.s32.totalorder %s18, 0
    %p144 = por %p142, %p143
    %p145 = scmp.ne.s32.totalorder %s133, %s134
    %p146 = scmp.eq.s32.totalorder %s19, 1
    %p147 = por %p145, %p146
    %p149 = scmp.ne.s32.totalorder %s134, %s148
    %p150 = scmp.eq.s32.totalorder %s19, 0
    %p151 = por %p149, %p150
    %s153 = sadd.s32 %s152, 1
    %p156 = scmp.eq.s32.totalorder %s13, 1
    %p157 = scmp.ne.s32.totalorder %s152, %s154
    %p158 = scmp.eq.s32.totalorder %s13, 0
    %p159 = por %p157, %p158
    %p160 = scmp.ne.s32.totalorder %s152, %s154
    %p161 = scmp.eq.s32.totalorder %s18, 1
    %p162 = por %p160, %p161
    %p163 = scmp.ne.s32.totalorder %s154, %s155
    %p164 = scmp.eq.s32.totalorder %s18, 0
    %p165 = por %p163, %p164
    %p166 = scmp.ne.s32.totalorder %s154, %s155
    %p167 = scmp.eq.s32.totalorder %s19, 1
    %p168 = por %p166, %p167
    %p170 = scmp.ne.s32.totalorder %s155, %s169
    %p171 = scmp.eq.s32.totalorder %s19, 0
    %p172 = por %p170, %p171
    %s173 = ssub.s32 %s13, %s20
    %p174 = scmp.eq.s32.totalorder %s173, 0
    %s176 = sadd.s32 %s175, 1
    %s177 = scalar_select %p174, %s175, %s176
    %p180 = pneg %p174
    %p181 = scmp.eq.s32.totalorder %s13, 1
    %p182 = por %p180, %p181
    %p183 = scmp.ne.s32.totalorder %s175, %s178
    %p184 = scmp.eq.s32.totalorder %s13, 0
    %p185 = por %p183, %p184
    %p186 = scmp.ne.s32.totalorder %s175, %s178
    %p187 = scmp.eq.s32.totalorder %s18, 1
    %p188 = por %p186, %p187
    %p189 = scmp.ne.s32.totalorder %s178, %s179
    %p190 = scmp.eq.s32.totalorder %s18, 0
    %p191 = por %p189, %p190
    %p192 = scmp.ne.s32.totalorder %s178, %s179
    %p193 = scmp.eq.s32.totalorder %s19, 1
    %p194 = por %p192, %p193
    %p196 = scmp.ne.s32.totalorder %s179, %s195
    %p197 = scmp.eq.s32.totalorder %s19, 0
    %p198 = por %p196, %p197
    %p199 = scmp.le.s32.totalorder 1, %s13
    %p200 = scmp.lt.s32.totalorder %s13, 3
    %p201 = pnand %p199, %p200
    %p202 = pneg %p201
    // Predicated region
    $region9: #{qnet_forward.1} parent=5 // pred_check
      _
    $region10: #{qnet_forward.1} parent=5 // pred_check_branch
      %204 = sbr.rel (%p201) target = $region12
    $region11: #{qnet_forward.1} parent=5 // pred_region
      %s205 = ssub.s32 %s13, 1
      // Predicated region
      $region13: #{qnet_forward.1} parent=11 // pred_check
        %p206 = pneg %p60
      $region14: #{qnet_forward.1} parent=11 // pred_check_branch
        %208 = sbr.rel (%p206) target = $region16
      $region15: #{qnet_forward.1} parent=11 // pred_region
        _
      $region16: #{qnet_forward.1} parent=11 // pred_fallthru
        _
      // Predicated region
      $region17: #{qnet_forward.1} parent=11 // pred_check
        %p209 = pneg %p81
      $region18: #{qnet_forward.1} parent=11 // pred_check_branch
        %211 = sbr.rel (%p209) target = $region20
      $region19: #{qnet_forward.1} parent=11 // pred_region
        _
      $region20: #{qnet_forward.1} parent=11 // pred_fallthru
        _
      // Predicated region
      $region21: #{qnet_forward.1} parent=11 // pred_check
        %p212 = pneg %p102
      $region22: #{qnet_forward.1} parent=11 // pred_check_branch
        %214 = sbr.rel (%p212) target = $region24
      $region23: #{qnet_forward.1} parent=11 // pred_region
        _
      $region24: #{qnet_forward.1} parent=11 // pred_fallthru
        _
      // Predicated region
      $region25: #{qnet_forward.1} parent=11 // pred_check
        %p215 = pneg %p123
      $region26: #{qnet_forward.1} parent=11 // pred_check_branch
        %217 = sbr.rel (%p215) target = $region28
      $region27: #{qnet_forward.1} parent=11 // pred_region
        _
      $region28: #{qnet_forward.1} parent=11 // pred_fallthru
        _
      // Predicated region
      $region29: #{qnet_forward.1} parent=11 // pred_check
        %p218 = pneg %p144
      $region30: #{qnet_forward.1} parent=11 // pred_check_branch
        %220 = sbr.rel (%p218) target = $region32
      $region31: #{qnet_forward.1} parent=11 // pred_region
        _
      $region32: #{qnet_forward.1} parent=11 // pred_fallthru
        _
      // Predicated region
      $region33: #{qnet_forward.1} parent=11 // pred_check
        %p221 = pneg %p165
      $region34: #{qnet_forward.1} parent=11 // pred_check_branch
        %223 = sbr.rel (%p221) target = $region36
      $region35: #{qnet_forward.1} parent=11 // pred_region
        _
      $region36: #{qnet_forward.1} parent=11 // pred_fallthru
        _
    $region12: #{qnet_forward.1} parent=5 // pred_fallthru
      _
    %p224 = scmp.lt.s32.totalorder %s13, 2
    // Predicated region
    $region37: #{qnet_forward.1} parent=5 // pred_check
      %p225 = pneg %p224
    $region38: #{qnet_forward.1} parent=5 // pred_check_branch
      %227 = sbr.rel (%p225) target = $region40
    $region39: #{qnet_forward.1} parent=5 // pred_region
      // Predicated region
      $region41: #{qnet_forward.1} parent=39 // pred_check
        %p228 = pneg %p33
      $region42: #{qnet_forward.1} parent=39 // pred_check_branch
        %230 = sbr.rel (%p228) target = $region44
      $region43: #{qnet_forward.1} parent=39 // pred_region
        %s231 = smul.u32 16, %s13
        %p232 = scmp.lt.s32.totalorder %s231, 31
        %s233 = scalar_select %p232, %s231, 31
        %s234 = smul.addr %s233, 3
        %s235 = smul.addr %s234, 4
        %s236 = scalar_lea.vmem %s0, %s235
        %s237 = smul.u32 16, %s13
      $region44: #{qnet_forward.1} parent=39 // pred_fallthru
        _
    $region40: #{qnet_forward.1} parent=5 // pred_fallthru
      _
    %p238 = scmp.le.s32.totalorder 1, %s13
    %p239 = scmp.lt.s32.totalorder %s13, 3
    %p240 = pnand %p238, %p239
    %p241 = pneg %p240
    // Predicated region
    $region45: #{qnet_forward.1} parent=5 // pred_check
      _
    $region46: #{qnet_forward.1} parent=5 // pred_check_branch
      %243 = sbr.rel (%p240) target = $region48
    $region47: #{qnet_forward.1} parent=5 // pred_region
      %s244 = ssub.s32 %s13, 1
      %s245 = smul.u32 16, %s18
      %p246 = scmp.lt.s32.totalorder %s245, 31
      %s247 = scalar_select %p246, %s245, 31
      %s248 = smul.addr %s247, 3
      %s249 = smul.addr %s248, 4
      %s250 = scalar_lea.vmem %s0, %s249
      %p251 = pneg %p39
      %p252 = pneg %p36
      %p253 = pneg %p60
      %p254 = pneg %p57
      %p255 = pneg %p81
      %p256 = pneg %p78
      %p257 = pneg %p102
      %p258 = pneg %p99
      %p259 = pneg %p123
      %p260 = pneg %p120
      %p261 = pneg %p144
      %p262 = pneg %p141
      %p263 = pneg %p165
      %p264 = pneg %p162
      %p265 = pneg %p191
      %p266 = pneg %p188
      %s267 = smul.u32 16, %s18
      %p268 = scmp.lt.s32.totalorder %s267, 31
      %s269 = scalar_select %p268, %s267, 31
      %s270 = smul.addr %s269, 8
      %s271 = scalar_lea.vmem %s7, %s270
      %s272 = smul.u32 16, %s18
      %p273 = scmp.lt.s32.totalorder %s272, 31
      %s274 = scalar_select %p273, %s272, 31
      %s275 = smul.addr %s274, 3
      %s276 = smul.addr %s275, 4
      %s277 = scalar_lea.vmem %s0, %s276
      %s278 = smul.u32 16, %s18
      %s279 = smul.u32 16, %s18
      %p280 = scmp.lt.s32.totalorder %s279, 31
      %s281 = scalar_select %p280, %s279, 31
      %s282 = smul.addr %s281, 8
      %s283 = scalar_lea.vmem %s7, %s282
      %s284 = smul.u32 16, %s18
      %v285 = vld [vmem:[%s277] sm:$0xff]
      %v286 = vld [vmem:[%s277 + $0x8] sm:$0xf]
      %v287 = vld [vmem:[%s277 + $0xc] sm:$0xff]
      %v288 = vld [vmem:[%s277 + $0x14] sm:$0xf]
      %v289 = vld [vmem:[%s277 + $0x18] sm:$0xff]
      %v290 = vld [vmem:[%s277 + $0x20] sm:$0xf]
      %v291 = vld [vmem:[%s277 + $0x24] sm:$0xff]
      %v292 = vld [vmem:[%s277 + $0x2c] sm:$0xf]
      %v293 = vld [vmem:[%s277 + $0x30] sm:$0xff]
      %v294 = vld [vmem:[%s277 + $0x38] sm:$0xf]
      %v295 = vld [vmem:[%s277 + $0x3c] sm:$0xff]
      %v296 = vld [vmem:[%s277 + $0x44] sm:$0xf]
      %v297 = vld [vmem:[%s277 + $0x48] sm:$0xff]
      %v298 = vld [vmem:[%s277 + $0x50] sm:$0xf]
      %v299 = vld [vmem:[%s277 + $0x54] sm:$0xff]
      %v300 = vld [vmem:[%s277 + $0x5c] sm:$0xf]
      %v301 = vld [vmem:[%s277 + $0x60] sm:$0xff]
      %v302 = vld [vmem:[%s277 + $0x68] sm:$0xf]
      %v303 = vld [vmem:[%s277 + $0x6c] sm:$0xff]
      %v304 = vld [vmem:[%s277 + $0x74] sm:$0xf]
      %v305 = vld [vmem:[%s277 + $0x78] sm:$0xff]
      %v306 = vld [vmem:[%s277 + $0x80] sm:$0xf]
      %v307 = vld [vmem:[%s277 + $0x84] sm:$0xff]
      %v308 = vld [vmem:[%s277 + $0x8c] sm:$0xf]
      %v309 = vld [vmem:[%s277 + $0x90] sm:$0xff]
      %v310 = vld [vmem:[%s277 + $0x98] sm:$0xf]
      %v311 = vld [vmem:[%s277 + $0x9c] sm:$0xff]
      %v312 = vld [vmem:[%s277 + $0xa4] sm:$0xf]
      %v313 = vld [vmem:[%s277 + $0xa8] sm:$0xff]
      %v314 = vld [vmem:[%s277 + $0xb0] sm:$0xf]
      %v315 = vld [vmem:[%s277 + $0xb4] sm:$0xff]
      %v316 = vld [vmem:[%s277 + $0xbc] sm:$0xf]
      %v317 = vld [vmem:[%s1] sm:$0xff]
      %v318 = vld [vmem:[%s1 + $0x8] sm:$0xff]
      %v319 = vld [vmem:[%s1 + $0x10] sm:$0xff]
      %v320 = vld [vmem:[%s1 + $0x18] sm:$0xff]
      %v321 = vld [vmem:[%s1 + $0x20] sm:$0xff]
      %v322 = vld [vmem:[%s1 + $0x28] sm:$0xff]
      %v323 = vld [vmem:[%s1 + $0x30] sm:$0xff]
      %v324 = vld [vmem:[%s1 + $0x38] sm:$0xff]
      %v325 = vld [vmem:[%s1 + $0x40] sm:$0xff]
      %v326 = vld [vmem:[%s1 + $0x48] sm:$0xff]
      %v327 = vld [vmem:[%s1 + $0x50] sm:$0xff]
      %v328 = vld [vmem:[%s1 + $0x58] sm:$0xff]
      %v329 = vld [vmem:[%s1 + $0x60] sm:$0xff]
      %v330 = vld [vmem:[%s1 + $0x68] sm:$0xff]
      %v331 = vld [vmem:[%s1 + $0x70] sm:$0xff]
      %v332 = vld [vmem:[%s1 + $0x78] sm:$0xff]
      %v333 = vld [vmem:[%s1 + $0x80] sm:$0xff]
      %v334 = vld [vmem:[%s1 + $0x88] sm:$0xff]
      %v335 = vld [vmem:[%s1 + $0x90] sm:$0xff]
      %v336 = vld [vmem:[%s1 + $0x98] sm:$0xff]
      %v337 = vld [vmem:[%s1 + $0xa0] sm:$0xff]
      %v338 = vld [vmem:[%s1 + $0xa8] sm:$0xff]
      %v339 = vld [vmem:[%s1 + $0xb0] sm:$0xff]
      %v340 = vld [vmem:[%s1 + $0xb8] sm:$0xff]
      %v341 = vld [vmem:[%s1 + $0xc0] sm:$0xff]
      %v342 = vld [vmem:[%s1 + $0xc8] sm:$0xff]
      %v343 = vld [vmem:[%s1 + $0xd0] sm:$0xff]
      %v344 = vld [vmem:[%s1 + $0xd8] sm:$0xff]
      %v345 = vld [vmem:[%s1 + $0xe0] sm:$0xff]
      %v346 = vld [vmem:[%s1 + $0xe8] sm:$0xff]
      %v347 = vld [vmem:[%s1 + $0xf0] sm:$0xff]
      %v348 = vld [vmem:[%s1 + $0xf8] sm:$0xff]
      %v349 = vld [vmem:[%s1 + $0x100] sm:$0xff]
      %v350 = vld [vmem:[%s1 + $0x108] sm:$0xff]
      %v351 = vld [vmem:[%s1 + $0x110] sm:$0xff]
      %v352 = vld [vmem:[%s1 + $0x118] sm:$0xff]
      %v353 = vld [vmem:[%s1 + $0x120] sm:$0xff]
      %v354 = vld [vmem:[%s1 + $0x128] sm:$0xff]
      %v355 = vld [vmem:[%s1 + $0x130] sm:$0xff]
      %v356 = vld [vmem:[%s1 + $0x138] sm:$0xff]
      %v357 = vld [vmem:[%s1 + $0x140] sm:$0xff]
      %v358 = vld [vmem:[%s1 + $0x148] sm:$0xff]
      %v359 = vld [vmem:[%s1 + $0x150] sm:$0xff]
      %v360 = vld [vmem:[%s1 + $0x158] sm:$0xff]
      %v361 = vld [vmem:[%s1 + $0x160] sm:$0xff]
      %v362 = vld [vmem:[%s1 + $0x168] sm:$0xff]
      %v363 = vld [vmem:[%s1 + $0x170] sm:$0xff]
      %v364 = vld [vmem:[%s1 + $0x178] sm:$0xff]
      %v365 = vld [vmem:[%s2] sm:$0x3]
      %v367 = vperm.slane %v365, 0
      %v368 = vperm.slane %v365, 1
      %v403 = vunpack.c.l.b16 %v285
      %v404 = vunpack.c.h.b16 %v285
      %v405 = vunpack.c.l.b16 %v286
      %v406 = vunpack.c.l.b16 %v287
      %v407 = vunpack.c.h.b16 %v287
      %v408 = vunpack.c.l.b16 %v288
      %v409 = vunpack.c.l.b16 %v289
      %v410 = vunpack.c.h.b16 %v289
      %v411 = vunpack.c.l.b16 %v290
      %v412 = vunpack.c.l.b16 %v291
      %v413 = vunpack.c.h.b16 %v291
      %v414 = vunpack.c.l.b16 %v292
      %v415 = vunpack.c.l.b16 %v293
      %v416 = vunpack.c.h.b16 %v293
      %v417 = vunpack.c.l.b16 %v294
      %v418 = vunpack.c.l.b16 %v295
      %v419 = vunpack.c.h.b16 %v295
      %v420 = vunpack.c.l.b16 %v296
      %v421 = vunpack.c.l.b16 %v297
      %v422 = vunpack.c.h.b16 %v297
      %v423 = vunpack.c.l.b16 %v298
      %v424 = vunpack.c.l.b16 %v299
      %v425 = vunpack.c.h.b16 %v299
      %v426 = vunpack.c.l.b16 %v300
      %v427 = vunpack.c.l.b16 %v301
      %v428 = vunpack.c.h.b16 %v301
      %v429 = vunpack.c.l.b16 %v302
      %v430 = vunpack.c.l.b16 %v303
      %v431 = vunpack.c.h.b16 %v303
      %v432 = vunpack.c.l.b16 %v304
      %v433 = vunpack.c.l.b16 %v305
      %v434 = vunpack.c.h.b16 %v305
      %v435 = vunpack.c.l.b16 %v306
      %v436 = vunpack.c.l.b16 %v307
      %v437 = vunpack.c.h.b16 %v307
      %v438 = vunpack.c.l.b16 %v308
      %v439 = vunpack.c.l.b16 %v309
      %v440 = vunpack.c.h.b16 %v309
      %v441 = vunpack.c.l.b16 %v310
      %v442 = vunpack.c.l.b16 %v311
      %v443 = vunpack.c.h.b16 %v311
      %v444 = vunpack.c.l.b16 %v312
      %v445 = vunpack.c.l.b16 %v313
      %v446 = vunpack.c.h.b16 %v313
      %v447 = vunpack.c.l.b16 %v314
      %v448 = vunpack.c.l.b16 %v315
      %v449 = vunpack.c.h.b16 %v315
      %v450 = vunpack.c.l.b16 %v316
      %v451 = vpack.c.b16 %v406, %v403
      %v452 = vpack.c.b16 %v407, %v404
      %v453 = vpack.c.b16 %v408, %v405
      %v454 = vpack.c.b16 %v412, %v409
      %v455 = vpack.c.b16 %v413, %v410
      %v456 = vpack.c.b16 %v414, %v411
      %v457 = vpack.c.b16 %v418, %v415
      %v458 = vpack.c.b16 %v419, %v416
      %v459 = vpack.c.b16 %v420, %v417
      %v460 = vpack.c.b16 %v424, %v421
      %v461 = vpack.c.b16 %v425, %v422
      %v462 = vpack.c.b16 %v426, %v423
      %v463 = vpack.c.b16 %v430, %v427
      %v464 = vpack.c.b16 %v431, %v428
      %v465 = vpack.c.b16 %v432, %v429
      %v466 = vpack.c.b16 %v436, %v433
      %v467 = vpack.c.b16 %v437, %v434
      %v468 = vpack.c.b16 %v438, %v435
      %v469 = vpack.c.b16 %v442, %v439
      %v470 = vpack.c.b16 %v443, %v440
      %v471 = vpack.c.b16 %v444, %v441
      %v472 = vpack.c.b16 %v448, %v445
      %v473 = vpack.c.b16 %v449, %v446
      %v474 = vpack.c.b16 %v450, %v447
      %v547 = vunpack.c.l.b16 %v317
      %v548 = vunpack.c.h.b16 %v317
      %v549 = vunpack.c.l.b16 %v318
      %v550 = vunpack.c.h.b16 %v318
      %v551 = vunpack.c.l.b16 %v319
      %v552 = vunpack.c.h.b16 %v319
      %v553 = vunpack.c.l.b16 %v320
      %v554 = vunpack.c.h.b16 %v320
      %v555 = vunpack.c.l.b16 %v321
      %v556 = vunpack.c.h.b16 %v321
      %v557 = vunpack.c.l.b16 %v322
      %v558 = vunpack.c.h.b16 %v322
      %v559 = vunpack.c.l.b16 %v323
      %v560 = vunpack.c.h.b16 %v323
      %v561 = vunpack.c.l.b16 %v324
      %v562 = vunpack.c.h.b16 %v324
      %v563 = vunpack.c.l.b16 %v325
      %v564 = vunpack.c.h.b16 %v325
      %v565 = vunpack.c.l.b16 %v326
      %v566 = vunpack.c.h.b16 %v326
      %v567 = vunpack.c.l.b16 %v327
      %v568 = vunpack.c.h.b16 %v327
      %v569 = vunpack.c.l.b16 %v328
      %v570 = vunpack.c.h.b16 %v328
      %v571 = vunpack.c.l.b16 %v329
      %v572 = vunpack.c.h.b16 %v329
      %v573 = vunpack.c.l.b16 %v330
      %v574 = vunpack.c.h.b16 %v330
      %v575 = vunpack.c.l.b16 %v331
      %v576 = vunpack.c.h.b16 %v331
      %v577 = vunpack.c.l.b16 %v332
      %v578 = vunpack.c.h.b16 %v332
      %v579 = vunpack.c.l.b16 %v333
      %v580 = vunpack.c.h.b16 %v333
      %v581 = vunpack.c.l.b16 %v334
      %v582 = vunpack.c.h.b16 %v334
      %v583 = vunpack.c.l.b16 %v335
      %v584 = vunpack.c.h.b16 %v335
      %v585 = vunpack.c.l.b16 %v336
      %v586 = vunpack.c.h.b16 %v336
      %v587 = vunpack.c.l.b16 %v337
      %v588 = vunpack.c.h.b16 %v337
      %v589 = vunpack.c.l.b16 %v338
      %v590 = vunpack.c.h.b16 %v338
      %v591 = vunpack.c.l.b16 %v339
      %v592 = vunpack.c.h.b16 %v339
      %v593 = vunpack.c.l.b16 %v340
      %v594 = vunpack.c.h.b16 %v340
      %v595 = vunpack.c.l.b16 %v341
      %v596 = vunpack.c.h.b16 %v341
      %v597 = vunpack.c.l.b16 %v342
      %v598 = vunpack.c.h.b16 %v342
      %v599 = vunpack.c.l.b16 %v343
      %v600 = vunpack.c.h.b16 %v343
      %v601 = vunpack.c.l.b16 %v344
      %v602 = vunpack.c.h.b16 %v344
      %v603 = vunpack.c.l.b16 %v345
      %v604 = vunpack.c.h.b16 %v345
      %v605 = vunpack.c.l.b16 %v346
      %v606 = vunpack.c.h.b16 %v346
      %v607 = vunpack.c.l.b16 %v347
      %v608 = vunpack.c.h.b16 %v347
      %v609 = vunpack.c.l.b16 %v348
      %v610 = vunpack.c.h.b16 %v348
      %v611 = vunpack.c.l.b16 %v349
      %v612 = vunpack.c.h.b16 %v349
      %v613 = vunpack.c.l.b16 %v350
      %v614 = vunpack.c.h.b16 %v350
      %v615 = vunpack.c.l.b16 %v351
      %v616 = vunpack.c.h.b16 %v351
      %v617 = vunpack.c.l.b16 %v352
      %v618 = vunpack.c.h.b16 %v352
      %v619 = vunpack.c.l.b16 %v353
      %v620 = vunpack.c.h.b16 %v353
      %v621 = vunpack.c.l.b16 %v354
      %v622 = vunpack.c.h.b16 %v354
      %v623 = vunpack.c.l.b16 %v355
      %v624 = vunpack.c.h.b16 %v355
      %v625 = vunpack.c.l.b16 %v356
      %v626 = vunpack.c.h.b16 %v356
      %v627 = vunpack.c.l.b16 %v357
      %v628 = vunpack.c.h.b16 %v357
      %v629 = vunpack.c.l.b16 %v358
      %v630 = vunpack.c.h.b16 %v358
      %v631 = vunpack.c.l.b16 %v359
      %v632 = vunpack.c.h.b16 %v359
      %v633 = vunpack.c.l.b16 %v360
      %v634 = vunpack.c.h.b16 %v360
      %v635 = vunpack.c.l.b16 %v361
      %v636 = vunpack.c.h.b16 %v361
      %v637 = vunpack.c.l.b16 %v362
      %v638 = vunpack.c.h.b16 %v362
      %v639 = vunpack.c.l.b16 %v363
      %v640 = vunpack.c.h.b16 %v363
      %v641 = vunpack.c.l.b16 %v364
      %v642 = vunpack.c.h.b16 %v364
      %v643 = vpack.c.b16 %v549, %v547
      %v644 = vpack.c.b16 %v550, %v548
      %v645 = vpack.c.b16 %v553, %v551
      %v646 = vpack.c.b16 %v554, %v552
      %v647 = vpack.c.b16 %v557, %v555
      %v648 = vpack.c.b16 %v558, %v556
      %v649 = vpack.c.b16 %v561, %v559
      %v650 = vpack.c.b16 %v562, %v560
      %v651 = vpack.c.b16 %v565, %v563
      %v652 = vpack.c.b16 %v566, %v564
      %v653 = vpack.c.b16 %v569, %v567
      %v654 = vpack.c.b16 %v570, %v568
      %v655 = vpack.c.b16 %v573, %v571
      %v656 = vpack.c.b16 %v574, %v572
      %v657 = vpack.c.b16 %v577, %v575
      %v658 = vpack.c.b16 %v578, %v576
      %v659 = vpack.c.b16 %v581, %v579
      %v660 = vpack.c.b16 %v582, %v580
      %v661 = vpack.c.b16 %v585, %v583
      %v662 = vpack.c.b16 %v586, %v584
      %v663 = vpack.c.b16 %v589, %v587
      %v664 = vpack.c.b16 %v590, %v588
      %v665 = vpack.c.b16 %v593, %v591
      %v666 = vpack.c.b16 %v594, %v592
      %v667 = vpack.c.b16 %v597, %v595
      %v668 = vpack.c.b16 %v598, %v596
      %v669 = vpack.c.b16 %v601, %v599
      %v670 = vpack.c.b16 %v602, %v600
      %v671 = vpack.c.b16 %v605, %v603
      %v672 = vpack.c.b16 %v606, %v604
      %v673 = vpack.c.b16 %v609, %v607
      %v674 = vpack.c.b16 %v610, %v608
      %v675 = vpack.c.b16 %v613, %v611
      %v676 = vpack.c.b16 %v614, %v612
      %v677 = vpack.c.b16 %v617, %v615
      %v678 = vpack.c.b16 %v618, %v616
      %v679 = vpack.c.b16 %v621, %v619
      %v680 = vpack.c.b16 %v622, %v620
      %v681 = vpack.c.b16 %v625, %v623
      %v682 = vpack.c.b16 %v626, %v624
      %v683 = vpack.c.b16 %v629, %v627
      %v684 = vpack.c.b16 %v630, %v628
      %v685 = vpack.c.b16 %v633, %v631
      %v686 = vpack.c.b16 %v634, %v632
      %v687 = vpack.c.b16 %v637, %v635
      %v688 = vpack.c.b16 %v638, %v636
      %v689 = vpack.c.b16 %v641, %v639
      %v690 = vpack.c.b16 %v642, %v640
      %739 = vmatpush.bf16.msra.mxu0 %v657
      %740 = vmatpush.bf16.msra.mxu0 %v655
      %741 = vmatpush.bf16.msra.mxu0 %v653
      %742 = vmatpush.bf16.msra.mxu0 %v651
      %743 = vmatpush.bf16.msra.mxu0 %v649
      %744 = vmatpush.bf16.msra.mxu0 %v647
      %745 = vmatpush.bf16.msra.mxu0 %v645
      %746 = vmatpush.bf16.msra.mxu0 %v643
      %747 = vmatmul.bf16.gmra.mxu0 %v451
      %v748 = vpop.f32.mrf.mxu0
      %v749 = vadd.f32 %v367, %v748
      %v750 = vpop.f32.mrf.mxu0
      %v751 = vadd.f32 %v367, %v750
      %752 = vmatmul.bf16.gmra.mxu0 %v454
      %v753 = vpop.f32.mrf.mxu0
      %v754 = vadd.f32 %v367, %v753
      %v755 = vpop.f32.mrf.mxu0
      %v756 = vadd.f32 %v367, %v755
      %757 = vmatmul.bf16.gmra.mxu0 %v457
      %v758 = vpop.f32.mrf.mxu0
      %v759 = vadd.f32 %v367, %v758
      %v760 = vpop.f32.mrf.mxu0
      %v761 = vadd.f32 %v367, %v760
      %762 = vmatmul.bf16.gmra.mxu0 %v460
      %v763 = vpop.f32.mrf.mxu0
      %v764 = vadd.f32 %v367, %v763
      %v765 = vpop.f32.mrf.mxu0
      %v766 = vadd.f32 %v367, %v765
      %767 = vmatmul.bf16.gmra.mxu0 %v463
      %v768 = vpop.f32.mrf.mxu0
      %v769 = vadd.f32 %v367, %v768
      %v770 = vpop.f32.mrf.mxu0
      %v771 = vadd.f32 %v367, %v770
      %772 = vmatmul.bf16.gmra.mxu0 %v466
      %v773 = vpop.f32.mrf.mxu0
      %v774 = vadd.f32 %v367, %v773
      %v775 = vpop.f32.mrf.mxu0
      %v776 = vadd.f32 %v367, %v775
      %777 = vmatmul.bf16.gmra.mxu0 %v469
      %v778 = vpop.f32.mrf.mxu0
      %v779 = vadd.f32 %v367, %v778
      %v780 = vpop.f32.mrf.mxu0
      %v781 = vadd.f32 %v367, %v780
      %782 = vmatmul.bf16.gmra.mxu0 %v472
      %v783 = vpop.f32.mrf.mxu0
      %v784 = vadd.f32 %v367, %v783
      %v785 = vpop.f32.mrf.mxu0
      %v786 = vadd.f32 %v367, %v785
      %787 = vdwg.mxu0
      %788 = vmatpush.bf16.msra.mxu0 %v673
      %789 = vmatpush.bf16.msra.mxu0 %v671
      %790 = vmatpush.bf16.msra.mxu0 %v669
      %791 = vmatpush.bf16.msra.mxu0 %v667
      %792 = vmatpush.bf16.msra.mxu0 %v665
      %793 = vmatpush.bf16.msra.mxu0 %v663
      %794 = vmatpush.bf16.msra.mxu0 %v661
      %795 = vmatpush.bf16.msra.mxu0 %v659
      %796 = vmatmul.bf16.gmra.mxu0 %v452
      %v797 = vpop.f32.mrf.mxu0
      %v798 = vadd.f32 %v749, %v797
      %v799 = vpop.f32.mrf.mxu0
      %v800 = vadd.f32 %v751, %v799
      %801 = vmatmul.bf16.gmra.mxu0 %v455
      %v802 = vpop.f32.mrf.mxu0
      %v803 = vadd.f32 %v754, %v802
      %v804 = vpop.f32.mrf.mxu0
      %v805 = vadd.f32 %v756, %v804
      %806 = vmatmul.bf16.gmra.mxu0 %v458
      %v807 = vpop.f32.mrf.mxu0
      %v808 = vadd.f32 %v759, %v807
      %v809 = vpop.f32.mrf.mxu0
      %v810 = vadd.f32 %v761, %v809
      %811 = vmatmul.bf16.gmra.mxu0 %v461
      %v812 = vpop.f32.mrf.mxu0
      %v813 = vadd.f32 %v764, %v812
      %v814 = vpop.f32.mrf.mxu0
      %v815 = vadd.f32 %v766, %v814
      %816 = vmatmul.bf16.gmra.mxu0 %v464
      %v817 = vpop.f32.mrf.mxu0
      %v818 = vadd.f32 %v769, %v817
      %v819 = vpop.f32.mrf.mxu0
      %v820 = vadd.f32 %v771, %v819
      %821 = vmatmul.bf16.gmra.mxu0 %v467
      %v822 = vpop.f32.mrf.mxu0
      %v823 = vadd.f32 %v774, %v822
      %v824 = vpop.f32.mrf.mxu0
      %v825 = vadd.f32 %v776, %v824
      %826 = vmatmul.bf16.gmra.mxu0 %v470
      %v827 = vpop.f32.mrf.mxu0
      %v828 = vadd.f32 %v779, %v827
      %v829 = vpop.f32.mrf.mxu0
      %v830 = vadd.f32 %v781, %v829
      %831 = vmatmul.bf16.gmra.mxu0 %v473
      %v832 = vpop.f32.mrf.mxu0
      %v833 = vadd.f32 %v784, %v832
      %v834 = vpop.f32.mrf.mxu0
      %v835 = vadd.f32 %v786, %v834
      %836 = vdwg.mxu0
      %837 = vmatpush.bf16.msra.mxu0 %v689
      %838 = vmatpush.bf16.msra.mxu0 %v687
      %839 = vmatpush.bf16.msra.mxu0 %v685
      %840 = vmatpush.bf16.msra.mxu0 %v683
      %841 = vmatpush.bf16.msra.mxu0 %v681
      %842 = vmatpush.bf16.msra.mxu0 %v679
      %843 = vmatpush.bf16.msra.mxu0 %v677
      %844 = vmatpush.bf16.msra.mxu0 %v675
      %845 = vmatmul.bf16.gmra.mxu0 %v453
      %v846 = vpop.f32.mrf.mxu0
      %v847 = vadd.f32 %v798, %v846
      %v848 = vpop.f32.mrf.mxu0
      %v849 = vadd.f32 %v800, %v848
      %850 = vmatmul.bf16.gmra.mxu0 %v456
      %v851 = vpop.f32.mrf.mxu0
      %v852 = vadd.f32 %v803, %v851
      %v853 = vpop.f32.mrf.mxu0
      %v854 = vadd.f32 %v805, %v853
      %855 = vmatmul.bf16.gmra.mxu0 %v459
      %v856 = vpop.f32.mrf.mxu0
      %v857 = vadd.f32 %v808, %v856
      %v858 = vpop.f32.mrf.mxu0
      %v859 = vadd.f32 %v810, %v858
      %860 = vmatmul.bf16.gmra.mxu0 %v462
      %v861 = vpop.f32.mrf.mxu0
      %v862 = vadd.f32 %v813, %v861
      %v863 = vpop.f32.mrf.mxu0
      %v864 = vadd.f32 %v815, %v863
      %865 = vmatmul.bf16.gmra.mxu0 %v465
      %v866 = vpop.f32.mrf.mxu0
      %v867 = vadd.f32 %v818, %v866
      %v868 = vpop.f32.mrf.mxu0
      %v869 = vadd.f32 %v820, %v868
      %870 = vmatmul.bf16.gmra.mxu0 %v468
      %v871 = vpop.f32.mrf.mxu0
      %v872 = vadd.f32 %v823, %v871
      %v873 = vpop.f32.mrf.mxu0
      %v874 = vadd.f32 %v825, %v873
      %875 = vmatmul.bf16.gmra.mxu0 %v471
      %v876 = vpop.f32.mrf.mxu0
      %v877 = vadd.f32 %v828, %v876
      %v878 = vpop.f32.mrf.mxu0
      %v879 = vadd.f32 %v830, %v878
      %880 = vmatmul.bf16.gmra.mxu0 %v474
      %v881 = vpop.f32.mrf.mxu0
      %v882 = vadd.f32 %v833, %v881
      %v883 = vpop.f32.mrf.mxu0
      %v884 = vadd.f32 %v835, %v883
      %885 = vdwg.mxu0
      %886 = vmatpush.bf16.msra.mxu0 %v658
      %887 = vmatpush.bf16.msra.mxu0 %v656
      %888 = vmatpush.bf16.msra.mxu0 %v654
      %889 = vmatpush.bf16.msra.mxu0 %v652
      %890 = vmatpush.bf16.msra.mxu0 %v650
      %891 = vmatpush.bf16.msra.mxu0 %v648
      %892 = vmatpush.bf16.msra.mxu0 %v646
      %893 = vmatpush.bf16.msra.mxu0 %v644
      %894 = vmatmul.bf16.gmra.mxu0 %v451
      %v895 = vpop.f32.mrf.mxu0
      %v896 = vadd.f32 %v368, %v895
      %v897 = vpop.f32.mrf.mxu0
      %v898 = vadd.f32 %v368, %v897
      %899 = vmatmul.bf16.gmra.mxu0 %v454
      %v900 = vpop.f32.mrf.mxu0
      %v901 = vadd.f32 %v368, %v900
      %v902 = vpop.f32.mrf.mxu0
      %v903 = vadd.f32 %v368, %v902
      %904 = vmatmul.bf16.gmra.mxu0 %v457
      %v905 = vpop.f32.mrf.mxu0
      %v906 = vadd.f32 %v368, %v905
      %v907 = vpop.f32.mrf.mxu0
      %v908 = vadd.f32 %v368, %v907
      %909 = vmatmul.bf16.gmra.mxu0 %v460
      %v910 = vpop.f32.mrf.mxu0
      %v911 = vadd.f32 %v368, %v910
      %v912 = vpop.f32.mrf.mxu0
      %v913 = vadd.f32 %v368, %v912
      %914 = vmatmul.bf16.gmra.mxu0 %v463
      %v915 = vpop.f32.mrf.mxu0
      %v916 = vadd.f32 %v368, %v915
      %v917 = vpop.f32.mrf.mxu0
      %v918 = vadd.f32 %v368, %v917
      %919 = vmatmul.bf16.gmra.mxu0 %v466
      %v920 = vpop.f32.mrf.mxu0
      %v921 = vadd.f32 %v368, %v920
      %v922 = vpop.f32.mrf.mxu0
      %v923 = vadd.f32 %v368, %v922
      %924 = vmatmul.bf16.gmra.mxu0 %v469
      %v925 = vpop.f32.mrf.mxu0
      %v926 = vadd.f32 %v368, %v925
      %v927 = vpop.f32.mrf.mxu0
      %v928 = vadd.f32 %v368, %v927
      %929 = vmatmul.bf16.gmra.mxu0 %v472
      %v930 = vpop.f32.mrf.mxu0
      %v931 = vadd.f32 %v368, %v930
      %v932 = vpop.f32.mrf.mxu0
      %v933 = vadd.f32 %v368, %v932
      %934 = vdwg.mxu0
      %935 = vmatpush.bf16.msra.mxu0 %v674
      %936 = vmatpush.bf16.msra.mxu0 %v672
      %937 = vmatpush.bf16.msra.mxu0 %v670
      %938 = vmatpush.bf16.msra.mxu0 %v668
      %939 = vmatpush.bf16.msra.mxu0 %v666
      %940 = vmatpush.bf16.msra.mxu0 %v664
      %941 = vmatpush.bf16.msra.mxu0 %v662
      %942 = vmatpush.bf16.msra.mxu0 %v660
      %943 = vmatmul.bf16.gmra.mxu0 %v452
      %v944 = vpop.f32.mrf.mxu0
      %v945 = vadd.f32 %v896, %v944
      %v946 = vpop.f32.mrf.mxu0
      %v947 = vadd.f32 %v898, %v946
      %948 = vmatmul.bf16.gmra.mxu0 %v455
      %v949 = vpop.f32.mrf.mxu0
      %v950 = vadd.f32 %v901, %v949
      %v951 = vpop.f32.mrf.mxu0
      %v952 = vadd.f32 %v903, %v951
      %953 = vmatmul.bf16.gmra.mxu0 %v458
      %v954 = vpop.f32.mrf.mxu0
      %v955 = vadd.f32 %v906, %v954
      %v956 = vpop.f32.mrf.mxu0
      %v957 = vadd.f32 %v908, %v956
      %958 = vmatmul.bf16.gmra.mxu0 %v461
      %v959 = vpop.f32.mrf.mxu0
      %v960 = vadd.f32 %v911, %v959
      %v961 = vpop.f32.mrf.mxu0
      %v962 = vadd.f32 %v913, %v961
      %963 = vmatmul.bf16.gmra.mxu0 %v464
      %v964 = vpop.f32.mrf.mxu0
      %v965 = vadd.f32 %v916, %v964
      %v966 = vpop.f32.mrf.mxu0
      %v967 = vadd.f32 %v918, %v966
      %968 = vmatmul.bf16.gmra.mxu0 %v467
      %v969 = vpop.f32.mrf.mxu0
      %v970 = vadd.f32 %v921, %v969
      %v971 = vpop.f32.mrf.mxu0
      %v972 = vadd.f32 %v923, %v971
      %973 = vmatmul.bf16.gmra.mxu0 %v470
      %v974 = vpop.f32.mrf.mxu0
      %v975 = vadd.f32 %v926, %v974
      %v976 = vpop.f32.mrf.mxu0
      %v977 = vadd.f32 %v928, %v976
      %978 = vmatmul.bf16.gmra.mxu0 %v473
      %v979 = vpop.f32.mrf.mxu0
      %v980 = vadd.f32 %v931, %v979
      %v981 = vpop.f32.mrf.mxu0
      %v982 = vadd.f32 %v933, %v981
      %983 = vdwg.mxu0
      %984 = vmatpush.bf16.msra.mxu0 %v690
      %985 = vmatpush.bf16.msra.mxu0 %v688
      %986 = vmatpush.bf16.msra.mxu0 %v686
      %987 = vmatpush.bf16.msra.mxu0 %v684
      %988 = vmatpush.bf16.msra.mxu0 %v682
      %989 = vmatpush.bf16.msra.mxu0 %v680
      %990 = vmatpush.bf16.msra.mxu0 %v678
      %991 = vmatpush.bf16.msra.mxu0 %v676
      %992 = vmatmul.bf16.gmra.mxu0 %v453
      %v993 = vpop.f32.mrf.mxu0
      %v994 = vadd.f32 %v945, %v993
      %v995 = vpop.f32.mrf.mxu0
      %v996 = vadd.f32 %v947, %v995
      %997 = vmatmul.bf16.gmra.mxu0 %v456
      %v998 = vpop.f32.mrf.mxu0
      %v999 = vadd.f32 %v950, %v998
      %v1000 = vpop.f32.mrf.mxu0
      %v1001 = vadd.f32 %v952, %v1000
      %1002 = vmatmul.bf16.gmra.mxu0 %v459
      %v1003 = vpop.f32.mrf.mxu0
      %v1004 = vadd.f32 %v955, %v1003
      %v1005 = vpop.f32.mrf.mxu0
      %v1006 = vadd.f32 %v957, %v1005
      %1007 = vmatmul.bf16.gmra.mxu0 %v462
      %v1008 = vpop.f32.mrf.mxu0
      %v1009 = vadd.f32 %v960, %v1008
      %v1010 = vpop.f32.mrf.mxu0
      %v1011 = vadd.f32 %v962, %v1010
      %1012 = vmatmul.bf16.gmra.mxu0 %v465
      %v1013 = vpop.f32.mrf.mxu0
      %v1014 = vadd.f32 %v965, %v1013
      %v1015 = vpop.f32.mrf.mxu0
      %v1016 = vadd.f32 %v967, %v1015
      %1017 = vmatmul.bf16.gmra.mxu0 %v468
      %v1018 = vpop.f32.mrf.mxu0
      %v1019 = vadd.f32 %v970, %v1018
      %v1020 = vpop.f32.mrf.mxu0
      %v1021 = vadd.f32 %v972, %v1020
      %1022 = vmatmul.bf16.gmra.mxu0 %v471
      %v1023 = vpop.f32.mrf.mxu0
      %v1024 = vadd.f32 %v975, %v1023
      %v1025 = vpop.f32.mrf.mxu0
      %v1026 = vadd.f32 %v977, %v1025
      %1027 = vmatmul.bf16.gmra.mxu0 %v474
      %v1028 = vpop.f32.mrf.mxu0
      %v1029 = vadd.f32 %v980, %v1028
      %v1030 = vpop.f32.mrf.mxu0
      %v1031 = vadd.f32 %v982, %v1030
      %1032 = vdwg.mxu0
      %v1033 = vmax.f32 %v847, 0.0
      %v1034 = vmax.f32 %v994, 0.0
      %v1035 = vmax.f32 %v849, 0.0
      %v1036 = vmax.f32 %v996, 0.0
      %v1037 = vmax.f32 %v852, 0.0
      %v1038 = vmax.f32 %v999, 0.0
      %v1039 = vmax.f32 %v854, 0.0
      %v1040 = vmax.f32 %v1001, 0.0
      %v1041 = vmax.f32 %v857, 0.0
      %v1042 = vmax.f32 %v1004, 0.0
      %v1043 = vmax.f32 %v859, 0.0
      %v1044 = vmax.f32 %v1006, 0.0
      %v1045 = vmax.f32 %v862, 0.0
      %v1046 = vmax.f32 %v1009, 0.0
      %v1047 = vmax.f32 %v864, 0.0
      %v1048 = vmax.f32 %v1011, 0.0
      %v1049 = vmax.f32 %v867, 0.0
      %v1050 = vmax.f32 %v1014, 0.0
      %v1051 = vmax.f32 %v869, 0.0
      %v1052 = vmax.f32 %v1016, 0.0
      %v1053 = vmax.f32 %v872, 0.0
      %v1054 = vmax.f32 %v1019, 0.0
      %v1055 = vmax.f32 %v874, 0.0
      %v1056 = vmax.f32 %v1021, 0.0
      %v1057 = vmax.f32 %v877, 0.0
      %v1058 = vmax.f32 %v1024, 0.0
      %v1059 = vmax.f32 %v879, 0.0
      %v1060 = vmax.f32 %v1026, 0.0
      %v1061 = vmax.f32 %v882, 0.0
      %v1062 = vmax.f32 %v1029, 0.0
      %v1063 = vmax.f32 %v884, 0.0
      %v1064 = vmax.f32 %v1031, 0.0
      %v1065 = vpack.c.bf16 %v1035, %v1033
      %v1066 = vpack.c.bf16 %v1036, %v1034
      %v1067 = vpack.c.bf16 %v1039, %v1037
      %v1068 = vpack.c.bf16 %v1040, %v1038
      %v1069 = vpack.c.bf16 %v1043, %v1041
      %v1070 = vpack.c.bf16 %v1044, %v1042
      %v1071 = vpack.c.bf16 %v1047, %v1045
      %v1072 = vpack.c.bf16 %v1048, %v1046
      %v1073 = vpack.c.bf16 %v1051, %v1049
      %v1074 = vpack.c.bf16 %v1052, %v1050
      %v1075 = vpack.c.bf16 %v1055, %v1053
      %v1076 = vpack.c.bf16 %v1056, %v1054
      %v1077 = vpack.c.bf16 %v1059, %v1057
      %v1078 = vpack.c.bf16 %v1060, %v1058
      %v1079 = vpack.c.bf16 %v1063, %v1061
      %v1080 = vpack.c.bf16 %v1064, %v1062
      %v1081 = vld [vmem:[%s3] sm:$0xff]
      %v1082 = vld [vmem:[%s3 + $0x8] sm:$0xff]
      %v1083 = vld [vmem:[%s3 + $0x10] sm:$0xff]
      %v1084 = vld [vmem:[%s3 + $0x18] sm:$0xff]
      %v1085 = vld [vmem:[%s3 + $0x20] sm:$0xff]
      %v1086 = vld [vmem:[%s3 + $0x28] sm:$0xff]
      %v1087 = vld [vmem:[%s3 + $0x30] sm:$0xff]
      %v1088 = vld [vmem:[%s3 + $0x38] sm:$0xff]
      %v1089 = vld [vmem:[%s3 + $0x40] sm:$0xff]
      %v1090 = vld [vmem:[%s3 + $0x48] sm:$0xff]
      %v1091 = vld [vmem:[%s3 + $0x50] sm:$0xff]
      %v1092 = vld [vmem:[%s3 + $0x58] sm:$0xff]
      %v1093 = vld [vmem:[%s3 + $0x60] sm:$0xff]
      %v1094 = vld [vmem:[%s3 + $0x68] sm:$0xff]
      %v1095 = vld [vmem:[%s3 + $0x70] sm:$0xff]
      %v1096 = vld [vmem:[%s3 + $0x78] sm:$0xff]
      %v1097 = vld [vmem:[%s3 + $0x80] sm:$0xff]
      %v1098 = vld [vmem:[%s3 + $0x88] sm:$0xff]
      %v1099 = vld [vmem:[%s3 + $0x90] sm:$0xff]
      %v1100 = vld [vmem:[%s3 + $0x98] sm:$0xff]
      %v1101 = vld [vmem:[%s3 + $0xa0] sm:$0xff]
      %v1102 = vld [vmem:[%s3 + $0xa8] sm:$0xff]
      %v1103 = vld [vmem:[%s3 + $0xb0] sm:$0xff]
      %v1104 = vld [vmem:[%s3 + $0xb8] sm:$0xff]
      %v1105 = vld [vmem:[%s3 + $0xc0] sm:$0xff]
      %v1106 = vld [vmem:[%s3 + $0xc8] sm:$0xff]
      %v1107 = vld [vmem:[%s3 + $0xd0] sm:$0xff]
      %v1108 = vld [vmem:[%s3 + $0xd8] sm:$0xff]
      %v1109 = vld [vmem:[%s3 + $0xe0] sm:$0xff]
      %v1110 = vld [vmem:[%s3 + $0xe8] sm:$0xff]
      %v1111 = vld [vmem:[%s3 + $0xf0] sm:$0xff]
      %v1112 = vld [vmem:[%s3 + $0xf8] sm:$0xff]
      %v1113 = vld [vmem:[%s4] sm:$0x3]
      %v1115 = vperm.slane %v1113, 0
      %v1116 = vperm.slane %v1113, 1
      %v1151 = vunpack.c.l.b16 %v1081
      %v1152 = vunpack.c.h.b16 %v1081
      %v1153 = vunpack.c.l.b16 %v1082
      %v1154 = vunpack.c.h.b16 %v1082
      %v1155 = vunpack.c.l.b16 %v1083
      %v1156 = vunpack.c.h.b16 %v1083
      %v1157 = vunpack.c.l.b16 %v1084
      %v1158 = vunpack.c.h.b16 %v1084
      %v1159 = vunpack.c.l.b16 %v1085
      %v1160 = vunpack.c.h.b16 %v1085
      %v1161 = vunpack.c.l.b16 %v1086
      %v1162 = vunpack.c.h.b16 %v1086
      %v1163 = vunpack.c.l.b16 %v1087
      %v1164 = vunpack.c.h.b16 %v1087
      %v1165 = vunpack.c.l.b16 %v1088
      %v1166 = vunpack.c.h.b16 %v1088
      %v1167 = vunpack.c.l.b16 %v1089
      %v1168 = vunpack.c.h.b16 %v1089
      %v1169 = vunpack.c.l.b16 %v1090
      %v1170 = vunpack.c.h.b16 %v1090
      %v1171 = vunpack.c.l.b16 %v1091
      %v1172 = vunpack.c.h.b16 %v1091
      %v1173 = vunpack.c.l.b16 %v1092
      %v1174 = vunpack.c.h.b16 %v1092
      %v1175 = vunpack.c.l.b16 %v1093
      %v1176 = vunpack.c.h.b16 %v1093
      %v1177 = vunpack.c.l.b16 %v1094
      %v1178 = vunpack.c.h.b16 %v1094
      %v1179 = vunpack.c.l.b16 %v1095
      %v1180 = vunpack.c.h.b16 %v1095
      %v1181 = vunpack.c.l.b16 %v1096
      %v1182 = vunpack.c.h.b16 %v1096
      %v1183 = vunpack.c.l.b16 %v1097
      %v1184 = vunpack.c.h.b16 %v1097
      %v1185 = vunpack.c.l.b16 %v1098
      %v1186 = vunpack.c.h.b16 %v1098
      %v1187 = vunpack.c.l.b16 %v1099
      %v1188 = vunpack.c.h.b16 %v1099
      %v1189 = vunpack.c.l.b16 %v1100
      %v1190 = vunpack.c.h.b16 %v1100
      %v1191 = vunpack.c.l.b16 %v1101
      %v1192 = vunpack.c.h.b16 %v1101
      %v1193 = vunpack.c.l.b16 %v1102
      %v1194 = vunpack.c.h.b16 %v1102
      %v1195 = vunpack.c.l.b16 %v1103
      %v1196 = vunpack.c.h.b16 %v1103
      %v1197 = vunpack.c.l.b16 %v1104
      %v1198 = vunpack.c.h.b16 %v1104
      %v1199 = vunpack.c.l.b16 %v1105
      %v1200 = vunpack.c.h.b16 %v1105
      %v1201 = vunpack.c.l.b16 %v1106
      %v1202 = vunpack.c.h.b16 %v1106
      %v1203 = vunpack.c.l.b16 %v1107
      %v1204 = vunpack.c.h.b16 %v1107
      %v1205 = vunpack.c.l.b16 %v1108
      %v1206 = vunpack.c.h.b16 %v1108
      %v1207 = vunpack.c.l.b16 %v1109
      %v1208 = vunpack.c.h.b16 %v1109
      %v1209 = vunpack.c.l.b16 %v1110
      %v1210 = vunpack.c.h.b16 %v1110
      %v1211 = vunpack.c.l.b16 %v1111
      %v1212 = vunpack.c.h.b16 %v1111
      %v1213 = vunpack.c.l.b16 %v1112
      %v1214 = vunpack.c.h.b16 %v1112
      %v1215 = vpack.c.b16 %v1153, %v1151
      %v1216 = vpack.c.b16 %v1154, %v1152
      %v1217 = vpack.c.b16 %v1157, %v1155
      %v1218 = vpack.c.b16 %v1158, %v1156
      %v1219 = vpack.c.b16 %v1161, %v1159
      %v1220 = vpack.c.b16 %v1162, %v1160
      %v1221 = vpack.c.b16 %v1165, %v1163
      %v1222 = vpack.c.b16 %v1166, %v1164
      %v1223 = vpack.c.b16 %v1169, %v1167
      %v1224 = vpack.c.b16 %v1170, %v1168
      %v1225 = vpack.c.b16 %v1173, %v1171
      %v1226 = vpack.c.b16 %v1174, %v1172
      %v1227 = vpack.c.b16 %v1177, %v1175
      %v1228 = vpack.c.b16 %v1178, %v1176
      %v1229 = vpack.c.b16 %v1181, %v1179
      %v1230 = vpack.c.b16 %v1182, %v1180
      %v1231 = vpack.c.b16 %v1185, %v1183
      %v1232 = vpack.c.b16 %v1186, %v1184
      %v1233 = vpack.c.b16 %v1189, %v1187
      %v1234 = vpack.c.b16 %v1190, %v1188
      %v1235 = vpack.c.b16 %v1193, %v1191
      %v1236 = vpack.c.b16 %v1194, %v1192
      %v1237 = vpack.c.b16 %v1197, %v1195
      %v1238 = vpack.c.b16 %v1198, %v1196
      %v1239 = vpack.c.b16 %v1201, %v1199
      %v1240 = vpack.c.b16 %v1202, %v1200
      %v1241 = vpack.c.b16 %v1205, %v1203
      %v1242 = vpack.c.b16 %v1206, %v1204
      %v1243 = vpack.c.b16 %v1209, %v1207
      %v1244 = vpack.c.b16 %v1210, %v1208
      %v1245 = vpack.c.b16 %v1213, %v1211
      %v1246 = vpack.c.b16 %v1214, %v1212
      %1279 = vmatpush.bf16.msra.mxu0 %v1229
      %1280 = vmatpush.bf16.msra.mxu0 %v1227
      %1281 = vmatpush.bf16.msra.mxu0 %v1225
      %1282 = vmatpush.bf16.msra.mxu0 %v1223
      %1283 = vmatpush.bf16.msra.mxu0 %v1221
      %1284 = vmatpush.bf16.msra.mxu0 %v1219
      %1285 = vmatpush.bf16.msra.mxu0 %v1217
      %1286 = vmatpush.bf16.msra.mxu0 %v1215
      %1287 = vmatmul.bf16.gmra.mxu0 %v1065
      %v1288 = vpop.f32.mrf.mxu0
      %v1289 = vadd.f32 %v1115, %v1288
      %v1290 = vpop.f32.mrf.mxu0
      %v1291 = vadd.f32 %v1115, %v1290
      %1292 = vmatmul.bf16.gmra.mxu0 %v1067
      %v1293 = vpop.f32.mrf.mxu0
      %v1294 = vadd.f32 %v1115, %v1293
      %v1295 = vpop.f32.mrf.mxu0
      %v1296 = vadd.f32 %v1115, %v1295
      %1297 = vmatmul.bf16.gmra.mxu0 %v1069
      %v1298 = vpop.f32.mrf.mxu0
      %v1299 = vadd.f32 %v1115, %v1298
      %v1300 = vpop.f32.mrf.mxu0
      %v1301 = vadd.f32 %v1115, %v1300
      %1302 = vmatmul.bf16.gmra.mxu0 %v1071
      %v1303 = vpop.f32.mrf.mxu0
      %v1304 = vadd.f32 %v1115, %v1303
      %v1305 = vpop.f32.mrf.mxu0
      %v1306 = vadd.f32 %v1115, %v1305
      %1307 = vmatmul.bf16.gmra.mxu0 %v1073
      %v1308 = vpop.f32.mrf.mxu0
      %v1309 = vadd.f32 %v1115, %v1308
      %v1310 = vpop.f32.mrf.mxu0
      %v1311 = vadd.f32 %v1115, %v1310
      %1312 = vmatmul.bf16.gmra.mxu0 %v1075
      %v1313 = vpop.f32.mrf.mxu0
      %v1314 = vadd.f32 %v1115, %v1313
      %v1315 = vpop.f32.mrf.mxu0
      %v1316 = vadd.f32 %v1115, %v1315
      %1317 = vmatmul.bf16.gmra.mxu0 %v1077
      %v1318 = vpop.f32.mrf.mxu0
      %v1319 = vadd.f32 %v1115, %v1318
      %v1320 = vpop.f32.mrf.mxu0
      %v1321 = vadd.f32 %v1115, %v1320
      %1322 = vmatmul.bf16.gmra.mxu0 %v1079
      %v1323 = vpop.f32.mrf.mxu0
      %v1324 = vadd.f32 %v1115, %v1323
      %v1325 = vpop.f32.mrf.mxu0
      %v1326 = vadd.f32 %v1115, %v1325
      %1327 = vdwg.mxu0
      %1328 = vmatpush.bf16.msra.mxu0 %v1245
      %1329 = vmatpush.bf16.msra.mxu0 %v1243
      %1330 = vmatpush.bf16.msra.mxu0 %v1241
      %1331 = vmatpush.bf16.msra.mxu0 %v1239
      %1332 = vmatpush.bf16.msra.mxu0 %v1237
      %1333 = vmatpush.bf16.msra.mxu0 %v1235
      %1334 = vmatpush.bf16.msra.mxu0 %v1233
      %1335 = vmatpush.bf16.msra.mxu0 %v1231
      %1336 = vmatmul.bf16.gmra.mxu0 %v1066
      %v1337 = vpop.f32.mrf.mxu0
      %v1338 = vadd.f32 %v1289, %v1337
      %v1339 = vpop.f32.mrf.mxu0
      %v1340 = vadd.f32 %v1291, %v1339
      %1341 = vmatmul.bf16.gmra.mxu0 %v1068
      %v1342 = vpop.f32.mrf.mxu0
      %v1343 = vadd.f32 %v1294, %v1342
      %v1344 = vpop.f32.mrf.mxu0
      %v1345 = vadd.f32 %v1296, %v1344
      %1346 = vmatmul.bf16.gmra.mxu0 %v1070
      %v1347 = vpop.f32.mrf.mxu0
      %v1348 = vadd.f32 %v1299, %v1347
      %v1349 = vpop.f32.mrf.mxu0
      %v1350 = vadd.f32 %v1301, %v1349
      %1351 = vmatmul.bf16.gmra.mxu0 %v1072
      %v1352 = vpop.f32.mrf.mxu0
      %v1353 = vadd.f32 %v1304, %v1352
      %v1354 = vpop.f32.mrf.mxu0
      %v1355 = vadd.f32 %v1306, %v1354
      %1356 = vmatmul.bf16.gmra.mxu0 %v1074
      %v1357 = vpop.f32.mrf.mxu0
      %v1358 = vadd.f32 %v1309, %v1357
      %v1359 = vpop.f32.mrf.mxu0
      %v1360 = vadd.f32 %v1311, %v1359
      %1361 = vmatmul.bf16.gmra.mxu0 %v1076
      %v1362 = vpop.f32.mrf.mxu0
      %v1363 = vadd.f32 %v1314, %v1362
      %v1364 = vpop.f32.mrf.mxu0
      %v1365 = vadd.f32 %v1316, %v1364
      %1366 = vmatmul.bf16.gmra.mxu0 %v1078
      %v1367 = vpop.f32.mrf.mxu0
      %v1368 = vadd.f32 %v1319, %v1367
      %v1369 = vpop.f32.mrf.mxu0
      %v1370 = vadd.f32 %v1321, %v1369
      %1371 = vmatmul.bf16.gmra.mxu0 %v1080
      %v1372 = vpop.f32.mrf.mxu0
      %v1373 = vadd.f32 %v1324, %v1372
      %v1374 = vpop.f32.mrf.mxu0
      %v1375 = vadd.f32 %v1326, %v1374
      %1376 = vdwg.mxu0
      %1377 = vmatpush.bf16.msra.mxu0 %v1230
      %1378 = vmatpush.bf16.msra.mxu0 %v1228
      %1379 = vmatpush.bf16.msra.mxu0 %v1226
      %1380 = vmatpush.bf16.msra.mxu0 %v1224
      %1381 = vmatpush.bf16.msra.mxu0 %v1222
      %1382 = vmatpush.bf16.msra.mxu0 %v1220
      %1383 = vmatpush.bf16.msra.mxu0 %v1218
      %1384 = vmatpush.bf16.msra.mxu0 %v1216
      %1385 = vmatmul.bf16.gmra.mxu0 %v1065
      %v1386 = vpop.f32.mrf.mxu0
      %v1387 = vadd.f32 %v1116, %v1386
      %v1388 = vpop.f32.mrf.mxu0
      %v1389 = vadd.f32 %v1116, %v1388
      %1390 = vmatmul.bf16.gmra.mxu0 %v1067
      %v1391 = vpop.f32.mrf.mxu0
      %v1392 = vadd.f32 %v1116, %v1391
      %v1393 = vpop.f32.mrf.mxu0
      %v1394 = vadd.f32 %v1116, %v1393
      %1395 = vmatmul.bf16.gmra.mxu0 %v1069
      %v1396 = vpop.f32.mrf.mxu0
      %v1397 = vadd.f32 %v1116, %v1396
      %v1398 = vpop.f32.mrf.mxu0
      %v1399 = vadd.f32 %v1116, %v1398
      %1400 = vmatmul.bf16.gmra.mxu0 %v1071
      %v1401 = vpop.f32.mrf.mxu0
      %v1402 = vadd.f32 %v1116, %v1401
      %v1403 = vpop.f32.mrf.mxu0
      %v1404 = vadd.f32 %v1116, %v1403
      %1405 = vmatmul.bf16.gmra.mxu0 %v1073
      %v1406 = vpop.f32.mrf.mxu0
      %v1407 = vadd.f32 %v1116, %v1406
      %v1408 = vpop.f32.mrf.mxu0
      %v1409 = vadd.f32 %v1116, %v1408
      %1410 = vmatmul.bf16.gmra.mxu0 %v1075
      %v1411 = vpop.f32.mrf.mxu0
      %v1412 = vadd.f32 %v1116, %v1411
      %v1413 = vpop.f32.mrf.mxu0
      %v1414 = vadd.f32 %v1116, %v1413
      %1415 = vmatmul.bf16.gmra.mxu0 %v1077
      %v1416 = vpop.f32.mrf.mxu0
      %v1417 = vadd.f32 %v1116, %v1416
      %v1418 = vpop.f32.mrf.mxu0
      %v1419 = vadd.f32 %v1116, %v1418
      %1420 = vmatmul.bf16.gmra.mxu0 %v1079
      %v1421 = vpop.f32.mrf.mxu0
      %v1422 = vadd.f32 %v1116, %v1421
      %v1423 = vpop.f32.mrf.mxu0
      %v1424 = vadd.f32 %v1116, %v1423
      %1425 = vdwg.mxu0
      %1426 = vmatpush.bf16.msra.mxu0 %v1246
      %1427 = vmatpush.bf16.msra.mxu0 %v1244
      %1428 = vmatpush.bf16.msra.mxu0 %v1242
      %1429 = vmatpush.bf16.msra.mxu0 %v1240
      %1430 = vmatpush.bf16.msra.mxu0 %v1238
      %1431 = vmatpush.bf16.msra.mxu0 %v1236
      %1432 = vmatpush.bf16.msra.mxu0 %v1234
      %1433 = vmatpush.bf16.msra.mxu0 %v1232
      %1434 = vmatmul.bf16.gmra.mxu0 %v1066
      %v1435 = vpop.f32.mrf.mxu0
      %v1436 = vadd.f32 %v1387, %v1435
      %v1437 = vpop.f32.mrf.mxu0
      %v1438 = vadd.f32 %v1389, %v1437
      %1439 = vmatmul.bf16.gmra.mxu0 %v1068
      %v1440 = vpop.f32.mrf.mxu0
      %v1441 = vadd.f32 %v1392, %v1440
      %v1442 = vpop.f32.mrf.mxu0
      %v1443 = vadd.f32 %v1394, %v1442
      %1444 = vmatmul.bf16.gmra.mxu0 %v1070
      %v1445 = vpop.f32.mrf.mxu0
      %v1446 = vadd.f32 %v1397, %v1445
      %v1447 = vpop.f32.mrf.mxu0
      %v1448 = vadd.f32 %v1399, %v1447
      %1449 = vmatmul.bf16.gmra.mxu0 %v1072
      %v1450 = vpop.f32.mrf.mxu0
      %v1451 = vadd.f32 %v1402, %v1450
      %v1452 = vpop.f32.mrf.mxu0
      %v1453 = vadd.f32 %v1404, %v1452
      %1454 = vmatmul.bf16.gmra.mxu0 %v1074
      %v1455 = vpop.f32.mrf.mxu0
      %v1456 = vadd.f32 %v1407, %v1455
      %v1457 = vpop.f32.mrf.mxu0
      %v1458 = vadd.f32 %v1409, %v1457
      %1459 = vmatmul.bf16.gmra.mxu0 %v1076
      %v1460 = vpop.f32.mrf.mxu0
      %v1461 = vadd.f32 %v1412, %v1460
      %v1462 = vpop.f32.mrf.mxu0
      %v1463 = vadd.f32 %v1414, %v1462
      %1464 = vmatmul.bf16.gmra.mxu0 %v1078
      %v1465 = vpop.f32.mrf.mxu0
      %v1466 = vadd.f32 %v1417, %v1465
      %v1467 = vpop.f32.mrf.mxu0
      %v1468 = vadd.f32 %v1419, %v1467
      %1469 = vmatmul.bf16.gmra.mxu0 %v1080
      %v1470 = vpop.f32.mrf.mxu0
      %v1471 = vadd.f32 %v1422, %v1470
      %v1472 = vpop.f32.mrf.mxu0
      %v1473 = vadd.f32 %v1424, %v1472
      %1474 = vdwg.mxu0
      %v1475 = vmax.f32 %v1338, 0.0
      %v1476 = vmax.f32 %v1436, 0.0
      %v1477 = vmax.f32 %v1340, 0.0
      %v1478 = vmax.f32 %v1438, 0.0
      %v1479 = vmax.f32 %v1343, 0.0
      %v1480 = vmax.f32 %v1441, 0.0
      %v1481 = vmax.f32 %v1345, 0.0
      %v1482 = vmax.f32 %v1443, 0.0
      %v1483 = vmax.f32 %v1348, 0.0
      %v1484 = vmax.f32 %v1446, 0.0
      %v1485 = vmax.f32 %v1350, 0.0
      %v1486 = vmax.f32 %v1448, 0.0
      %v1487 = vmax.f32 %v1353, 0.0
      %v1488 = vmax.f32 %v1451, 0.0
      %v1489 = vmax.f32 %v1355, 0.0
      %v1490 = vmax.f32 %v1453, 0.0
      %v1491 = vmax.f32 %v1358, 0.0
      %v1492 = vmax.f32 %v1456, 0.0
      %v1493 = vmax.f32 %v1360, 0.0
      %v1494 = vmax.f32 %v1458, 0.0
      %v1495 = vmax.f32 %v1363, 0.0
      %v1496 = vmax.f32 %v1461, 0.0
      %v1497 = vmax.f32 %v1365, 0.0
      %v1498 = vmax.f32 %v1463, 0.0
      %v1499 = vmax.f32 %v1368, 0.0
      %v1500 = vmax.f32 %v1466, 0.0
      %v1501 = vmax.f32 %v1370, 0.0
      %v1502 = vmax.f32 %v1468, 0.0
      %v1503 = vmax.f32 %v1373, 0.0
      %v1504 = vmax.f32 %v1471, 0.0
      %v1505 = vmax.f32 %v1375, 0.0
      %v1506 = vmax.f32 %v1473, 0.0
      %v1507 = vpack.c.bf16 %v1477, %v1475
      %v1508 = vpack.c.bf16 %v1478, %v1476
      %v1509 = vpack.c.bf16 %v1481, %v1479
      %v1510 = vpack.c.bf16 %v1482, %v1480
      %v1511 = vpack.c.bf16 %v1485, %v1483
      %v1512 = vpack.c.bf16 %v1486, %v1484
      %v1513 = vpack.c.bf16 %v1489, %v1487
      %v1514 = vpack.c.bf16 %v1490, %v1488
      %v1515 = vpack.c.bf16 %v1493, %v1491
      %v1516 = vpack.c.bf16 %v1494, %v1492
      %v1517 = vpack.c.bf16 %v1497, %v1495
      %v1518 = vpack.c.bf16 %v1498, %v1496
      %v1519 = vpack.c.bf16 %v1501, %v1499
      %v1520 = vpack.c.bf16 %v1502, %v1500
      %v1521 = vpack.c.bf16 %v1505, %v1503
      %v1522 = vpack.c.bf16 %v1506, %v1504
      %v1523 = vld [vmem:[%s5] sm:$0xf]
      %v1524 = vld [vmem:[%s5 + $0x4] sm:$0xf]
      %v1525 = vld [vmem:[%s5 + $0x8] sm:$0xf]
      %v1526 = vld [vmem:[%s5 + $0xc] sm:$0xf]
      %v1527 = vld [vmem:[%s5 + $0x10] sm:$0xf]
      %v1528 = vld [vmem:[%s5 + $0x14] sm:$0xf]
      %v1529 = vld [vmem:[%s5 + $0x18] sm:$0xf]
      %v1530 = vld [vmem:[%s5 + $0x1c] sm:$0xf]
      %v1531 = vld [vmem:[%s5 + $0x20] sm:$0xf]
      %v1532 = vld [vmem:[%s5 + $0x24] sm:$0xf]
      %v1533 = vld [vmem:[%s5 + $0x28] sm:$0xf]
      %v1534 = vld [vmem:[%s5 + $0x2c] sm:$0xf]
      %v1535 = vld [vmem:[%s5 + $0x30] sm:$0xf]
      %v1536 = vld [vmem:[%s5 + $0x34] sm:$0xf]
      %v1537 = vld [vmem:[%s5 + $0x38] sm:$0xf]
      %v1538 = vld [vmem:[%s5 + $0x3c] sm:$0xf]
      %v1539 = vld [vmem:[%s5 + $0x40] sm:$0xf]
      %v1540 = vld [vmem:[%s5 + $0x44] sm:$0xf]
      %v1541 = vld [vmem:[%s5 + $0x48] sm:$0xf]
      %v1542 = vld [vmem:[%s5 + $0x4c] sm:$0xf]
      %v1543 = vld [vmem:[%s5 + $0x50] sm:$0xf]
      %v1544 = vld [vmem:[%s5 + $0x54] sm:$0xf]
      %v1545 = vld [vmem:[%s5 + $0x58] sm:$0xf]
      %v1546 = vld [vmem:[%s5 + $0x5c] sm:$0xf]
      %v1547 = vld [vmem:[%s5 + $0x60] sm:$0xf]
      %v1548 = vld [vmem:[%s5 + $0x64] sm:$0xf]
      %v1549 = vld [vmem:[%s5 + $0x68] sm:$0xf]
      %v1550 = vld [vmem:[%s5 + $0x6c] sm:$0xf]
      %v1551 = vld [vmem:[%s5 + $0x70] sm:$0xf]
      %v1552 = vld [vmem:[%s5 + $0x74] sm:$0xf]
      %v1553 = vld [vmem:[%s5 + $0x78] sm:$0xf]
      %v1554 = vld [vmem:[%s5 + $0x7c] sm:$0xf]
      %v1555 = vld [vmem:[%s6] sm:$0x1]
      %v1557 = vperm.slane %v1555, 0
      %v1591 = vunpack.c.l.b16 %v1523
      %v1592 = vunpack.c.l.b16 %v1524
      %v1593 = vunpack.c.l.b16 %v1525
      %v1594 = vunpack.c.l.b16 %v1526
      %v1595 = vunpack.c.l.b16 %v1527
      %v1596 = vunpack.c.l.b16 %v1528
      %v1597 = vunpack.c.l.b16 %v1529
      %v1598 = vunpack.c.l.b16 %v1530
      %v1599 = vunpack.c.l.b16 %v1531
      %v1600 = vunpack.c.l.b16 %v1532
      %v1601 = vunpack.c.l.b16 %v1533
      %v1602 = vunpack.c.l.b16 %v1534
      %v1603 = vunpack.c.l.b16 %v1535
      %v1604 = vunpack.c.l.b16 %v1536
      %v1605 = vunpack.c.l.b16 %v1537
      %v1606 = vunpack.c.l.b16 %v1538
      %v1607 = vunpack.c.l.b16 %v1539
      %v1608 = vunpack.c.l.b16 %v1540
      %v1609 = vunpack.c.l.b16 %v1541
      %v1610 = vunpack.c.l.b16 %v1542
      %v1611 = vunpack.c.l.b16 %v1543
      %v1612 = vunpack.c.l.b16 %v1544
      %v1613 = vunpack.c.l.b16 %v1545
      %v1614 = vunpack.c.l.b16 %v1546
      %v1615 = vunpack.c.l.b16 %v1547
      %v1616 = vunpack.c.l.b16 %v1548
      %v1617 = vunpack.c.l.b16 %v1549
      %v1618 = vunpack.c.l.b16 %v1550
      %v1619 = vunpack.c.l.b16 %v1551
      %v1620 = vunpack.c.l.b16 %v1552
      %v1621 = vunpack.c.l.b16 %v1553
      %v1622 = vunpack.c.l.b16 %v1554
      %v1623 = vpack.c.b16 %v1592, %v1591
      %v1624 = vpack.c.b16 %v1594, %v1593
      %v1625 = vpack.c.b16 %v1596, %v1595
      %v1626 = vpack.c.b16 %v1598, %v1597
      %v1627 = vpack.c.b16 %v1600, %v1599
      %v1628 = vpack.c.b16 %v1602, %v1601
      %v1629 = vpack.c.b16 %v1604, %v1603
      %v1630 = vpack.c.b16 %v1606, %v1605
      %v1631 = vpack.c.b16 %v1608, %v1607
      %v1632 = vpack.c.b16 %v1610, %v1609
      %v1633 = vpack.c.b16 %v1612, %v1611
      %v1634 = vpack.c.b16 %v1614, %v1613
      %v1635 = vpack.c.b16 %v1616, %v1615
      %v1636 = vpack.c.b16 %v1618, %v1617
      %v1637 = vpack.c.b16 %v1620, %v1619
      %v1638 = vpack.c.b16 %v1622, %v1621
      %1655 = vmatpush.bf16.msra.mxu0 %v1630
      %1656 = vmatpush.bf16.msra.mxu0 %v1629
      %1657 = vmatpush.bf16.msra.mxu0 %v1628
      %1658 = vmatpush.bf16.msra.mxu0 %v1627
      %1659 = vmatpush.bf16.msra.mxu0 %v1626
      %1660 = vmatpush.bf16.msra.mxu0 %v1625
      %1661 = vmatpush.bf16.msra.mxu0 %v1624
      %1662 = vmatpush.bf16.msra.mxu0 %v1623
      %1663 = vmatmul.bf16.gmra.mxu0 %v1507
      %v1664 = vpop.f32.mrf.mxu0
      %v1665 = vadd.f32 %v1557, %v1664
      %v1666 = vpop.f32.mrf.mxu0
      %v1667 = vadd.f32 %v1557, %v1666
      %1668 = vmatmul.bf16.gmra.mxu0 %v1509
      %v1669 = vpop.f32.mrf.mxu0
      %v1670 = vadd.f32 %v1557, %v1669
      %v1671 = vpop.f32.mrf.mxu0
      %v1672 = vadd.f32 %v1557, %v1671
      %1673 = vmatmul.bf16.gmra.mxu0 %v1511
      %v1674 = vpop.f32.mrf.mxu0
      %v1675 = vadd.f32 %v1557, %v1674
      %v1676 = vpop.f32.mrf.mxu0
      %v1677 = vadd.f32 %v1557, %v1676
      %1678 = vmatmul.bf16.gmra.mxu0 %v1513
      %v1679 = vpop.f32.mrf.mxu0
      %v1680 = vadd.f32 %v1557, %v1679
      %v1681 = vpop.f32.mrf.mxu0
      %v1682 = vadd.f32 %v1557, %v1681
      %1683 = vmatmul.bf16.gmra.mxu0 %v1515
      %v1684 = vpop.f32.mrf.mxu0
      %v1685 = vadd.f32 %v1557, %v1684
      %v1686 = vpop.f32.mrf.mxu0
      %v1687 = vadd.f32 %v1557, %v1686
      %1688 = vmatmul.bf16.gmra.mxu0 %v1517
      %v1689 = vpop.f32.mrf.mxu0
      %v1690 = vadd.f32 %v1557, %v1689
      %v1691 = vpop.f32.mrf.mxu0
      %v1692 = vadd.f32 %v1557, %v1691
      %1693 = vmatmul.bf16.gmra.mxu0 %v1519
      %v1694 = vpop.f32.mrf.mxu0
      %v1695 = vadd.f32 %v1557, %v1694
      %v1696 = vpop.f32.mrf.mxu0
      %v1697 = vadd.f32 %v1557, %v1696
      %1698 = vmatmul.bf16.gmra.mxu0 %v1521
      %v1699 = vpop.f32.mrf.mxu0
      %v1700 = vadd.f32 %v1557, %v1699
      %v1701 = vpop.f32.mrf.mxu0
      %v1702 = vadd.f32 %v1557, %v1701
      %1703 = vdwg.mxu0
      %1704 = vmatpush.bf16.msra.mxu0 %v1638
      %1705 = vmatpush.bf16.msra.mxu0 %v1637
      %1706 = vmatpush.bf16.msra.mxu0 %v1636
      %1707 = vmatpush.bf16.msra.mxu0 %v1635
      %1708 = vmatpush.bf16.msra.mxu0 %v1634
      %1709 = vmatpush.bf16.msra.mxu0 %v1633
      %1710 = vmatpush.bf16.msra.mxu0 %v1632
      %1711 = vmatpush.bf16.msra.mxu0 %v1631
      %1712 = vmatmul.bf16.gmra.mxu0 %v1508
      %v1713 = vpop.f32.mrf.mxu0
      %v1714 = vadd.f32 %v1665, %v1713
      %v1715 = vpop.f32.mrf.mxu0
      %v1716 = vadd.f32 %v1667, %v1715
      %1717 = vmatmul.bf16.gmra.mxu0 %v1510
      %v1718 = vpop.f32.mrf.mxu0
      %v1719 = vadd.f32 %v1670, %v1718
      %v1720 = vpop.f32.mrf.mxu0
      %v1721 = vadd.f32 %v1672, %v1720
      %1722 = vmatmul.bf16.gmra.mxu0 %v1512
      %v1723 = vpop.f32.mrf.mxu0
      %v1724 = vadd.f32 %v1675, %v1723
      %v1725 = vpop.f32.mrf.mxu0
      %v1726 = vadd.f32 %v1677, %v1725
      %1727 = vmatmul.bf16.gmra.mxu0 %v1514
      %v1728 = vpop.f32.mrf.mxu0
      %v1729 = vadd.f32 %v1680, %v1728
      %v1730 = vpop.f32.mrf.mxu0
      %v1731 = vadd.f32 %v1682, %v1730
      %1732 = vmatmul.bf16.gmra.mxu0 %v1516
      %v1733 = vpop.f32.mrf.mxu0
      %v1734 = vadd.f32 %v1685, %v1733
      %v1735 = vpop.f32.mrf.mxu0
      %v1736 = vadd.f32 %v1687, %v1735
      %1737 = vmatmul.bf16.gmra.mxu0 %v1518
      %v1738 = vpop.f32.mrf.mxu0
      %v1739 = vadd.f32 %v1690, %v1738
      %v1740 = vpop.f32.mrf.mxu0
      %v1741 = vadd.f32 %v1692, %v1740
      %1742 = vmatmul.bf16.gmra.mxu0 %v1520
      %v1743 = vpop.f32.mrf.mxu0
      %v1744 = vadd.f32 %v1695, %v1743
      %v1745 = vpop.f32.mrf.mxu0
      %v1746 = vadd.f32 %v1697, %v1745
      %1747 = vmatmul.bf16.gmra.mxu0 %v1522
      %v1748 = vpop.f32.mrf.mxu0
      %v1749 = vadd.f32 %v1700, %v1748
      %v1750 = vpop.f32.mrf.mxu0
      %v1751 = vadd.f32 %v1702, %v1750
      %1752 = vdwg.mxu0
      %1753 = vst [vmem:[%s283] sm:$0xff] %v1714
      %1754 = vst [vmem:[%s283 + $0x8] sm:$0xff] %v1716
      %1755 = vst [vmem:[%s283 + $0x10] sm:$0xff] %v1719
      %1756 = vst [vmem:[%s283 + $0x18] sm:$0xff] %v1721
      %1757 = vst [vmem:[%s283 + $0x20] sm:$0xff] %v1724
      %1758 = vst [vmem:[%s283 + $0x28] sm:$0xff] %v1726
      %1759 = vst [vmem:[%s283 + $0x30] sm:$0xff] %v1729
      %1760 = vst [vmem:[%s283 + $0x38] sm:$0xff] %v1731
      %1761 = vst [vmem:[%s283 + $0x40] sm:$0xff] %v1734
      %1762 = vst [vmem:[%s283 + $0x48] sm:$0xff] %v1736
      %1763 = vst [vmem:[%s283 + $0x50] sm:$0xff] %v1739
      %1764 = vst [vmem:[%s283 + $0x58] sm:$0xff] %v1741
      %1765 = vst [vmem:[%s283 + $0x60] sm:$0xff] %v1744
      %1766 = vst [vmem:[%s283 + $0x68] sm:$0xff] %v1746
      %1767 = vst [vmem:[%s283 + $0x70] sm:$0xff] %v1749
      %1768 = vst [vmem:[%s283 + $0x78] sm:$0xff] %v1751
      %s1769 = smul.u32 16, %s18
      %p1770 = scmp.lt.s32.totalorder %s1769, 31
      %s1771 = scalar_select %p1770, %s1769, 31
      %s1772 = smul.addr %s1771, 8
      %s1773 = scalar_lea.vmem %s7, %s1772
      // Predicated region
      $region49: #{qnet_forward.1} parent=47 // pred_check
        %p1774 = pneg %p188
      $region50: #{qnet_forward.1} parent=47 // pred_check_branch
        %1776 = sbr.rel (%p1774) target = $region52
      $region51: #{qnet_forward.1} parent=47 // pred_region
        %s1777 = smul.u32 16, %s18
      $region52: #{qnet_forward.1} parent=47 // pred_fallthru
        _
    $region48: #{qnet_forward.1} parent=5 // pred_fallthru
      _
    %p1778 = scmp.le.s32.totalorder 2, %s13
    // Predicated region
    $region53: #{qnet_forward.1} parent=5 // pred_check
      %p1779 = pneg %p1778
    $region54: #{qnet_forward.1} parent=5 // pred_check_branch
      %1781 = sbr.rel (%p1779) target = $region56
    $region55: #{qnet_forward.1} parent=5 // pred_region
      %s1782 = ssub.s32 %s13, 2
      // Predicated region
      $region57: #{qnet_forward.1} parent=55 // pred_check
        %p1783 = pneg %p194
      $region58: #{qnet_forward.1} parent=55 // pred_check_branch
        %1785 = sbr.rel (%p1783) target = $region60
      $region59: #{qnet_forward.1} parent=55 // pred_region
        %s1786 = smul.u32 16, %s19
        %p1787 = scmp.lt.s32.totalorder %s1786, 31
        %s1788 = scalar_select %p1787, %s1786, 31
        %s1789 = smul.addr %s1788, 8
        %s1790 = scalar_lea.vmem %s7, %s1789
      $region60: #{qnet_forward.1} parent=55 // pred_fallthru
        _
    $region56: #{qnet_forward.1} parent=5 // pred_fallthru
      _
  $region6: #{qnet_forward.1} parent=0 // loop_footer
    %s17 = sadd.s32 1, %s13
  $region7: #{qnet_forward.1} parent=0 // loop_footer_branch
    %12 = sbr.rel target = $region3
  $region8: #{qnet_forward.1} parent=0 // loop_exit
    _

</llo_original>
